<compile_context>
chip_gen: v7x
topology: tpu7x:2x2x1
jax: 0.10.0
libtpu: 0.0.40
codegen_flags: <defaults>
</compile_context>

<pallas_src>
import functools

import jax
import jax.numpy as jnp
from jax import lax
from jax.experimental import pallas as pl
from jax.experimental.pallas import tpu as pltpu


def _round_up(x, m):
    return ((x + m - 1) // m) * m


# ----------------------------------------------------------------------------
# Tiled Pallas matmul + bias (used for the hoisted vocabulary projection).
# Grid is ("parallel","parallel") so it can shard across both TensorCores on v7x.
# Defaults tm=512 / tn=256 feed the 256^2 MXU (v6e/v7x) and cut W_proj re-streaming;
# tiles are clipped down for small problems so padding stays bounded.
# ----------------------------------------------------------------------------
def _matmul_bias_kernel(a_ref, b_ref, bias_ref, o_ref):
    o_ref[...] = (jnp.dot(a_ref[...], b_ref[...],
                          preferred_element_type=jnp.float32)
                  + bias_ref[...])


def pallas_matmul_bias(a, b, bias, *, compute_dtype=jnp.float32, tm=512, tn=256):
    """out = a @ b + bias ; a:(M,K), b:(K,N), bias:(1,N) -> (M,N) f32."""
    M, K = a.shape
    _, N = b.shape
    tm = min(tm, _round_up(M, 8))
    tn = min(tn, _round_up(N, 128))
    Mp, Np = _round_up(M, tm), _round_up(N, tn)
    a_p = jnp.pad(a.astype(compute_dtype), ((0, Mp - M), (0, 0)))
    b_p = jnp.pad(b.astype(compute_dtype), ((0, 0), (0, Np - N)))
    bias_p = jnp.pad(bias.astype(jnp.float32), ((0, 0), (0, Np - N)))
    out = pl.pallas_call(
        _matmul_bias_kernel,
        out_shape=jax.ShapeDtypeStruct((Mp, Np), jnp.float32),
        grid_spec=pltpu.PrefetchScalarGridSpec(
            num_scalar_prefetch=0,
            grid=(Mp // tm, Np // tn),
            in_specs=[
                pl.BlockSpec((tm, K), lambda i, j: (i, 0)),   # K kept whole (small here)
                pl.BlockSpec((K, tn), lambda i, j: (0, j)),
                pl.BlockSpec((1, tn), lambda i, j: (0, j)),
            ],
            out_specs=pl.BlockSpec((tm, tn), lambda i, j: (i, j)),
        ),
        compiler_params=pltpu.CompilerParams(
            dimension_semantics=("parallel", "parallel")),
    )(a_p, b_p, bias_p)
    return out[:M, :N]


# ----------------------------------------------------------------------------
# Sequential GRU recurrence, time-chunked, with the input-gate matmul fused in.
# One grid step == TT timesteps:
#   1) gx for the whole chunk via one (TT*Bp, E) x (E, 3Hp) MXU matmul -> VMEM scratch
#   2) unrolled serial loop over TT steps; hidden state carried in vregs, one VMEM
#      writeback per chunk; lengths mask derived in-kernel from the resident lengths block.
# ----------------------------------------------------------------------------
def _gru_recurrence_kernel(x_ref, len_ref, h0_ref, wih_ref, bih_ref, whh_ref, bhh_ref,
                           hout_ref, h_scr, gx_scr, *, tt, bp, hp, compute_dtype):
    c = pl.program_id(0)

    @pl.when(c == 0)
    def _():
        h_scr[...] = h0_ref[...]

    # Fused input-gate matmul for the whole chunk (TT*Bp rows -> good MXU utilization).
    e = x_ref.shape[-1]
    x_chunk = x_ref[...].reshape(tt * bp, e)                 # already compute_dtype
    gx = jnp.dot(x_chunk, wih_ref[...],
                 preferred_element_type=jnp.float32) + bih_ref[...]
    gx_scr[...] = gx.reshape(tt, bp, 3 * hp)

    whh = whh_ref[...]            # pre-cast to compute_dtype in the wrapper (no per-chunk cast)
    bhh = bhh_ref[...]            # f32
    lens = len_ref[...]           # (Bp, 1) int32, resident (no per-step mask DMA)

    def step(s, h_prev):                                     # h_prev carried in vregs (f32)
        t_glob = c * tt + s
        gx_t = gx_scr[s]                                     # (Bp, 3Hp); lane-aligned gate slots
        gh = jnp.dot(h_prev.astype(compute_dtype), whh,
                     preferred_element_type=jnp.float32) + bhh
        r = jax.nn.sigmoid(gx_t[:, :hp] + gh[:, :hp])
        z = jax.nn.sigmoid(gx_t[:, hp:2 * hp] + gh[:, hp:2 * hp])
        n = jnp.tanh(gx_t[:, 2 * hp:] + r * gh[:, 2 * hp:])
        h_new = n + z * (h_prev - n)                         # == (1-z)*n + z*h_prev
        valid = t_glob < lens                                # packed-sequence mask from lengths
        h_next = jnp.where(valid, h_new, h_prev)             # freeze hidden past seq length
        hout_ref[s] = jnp.where(valid, h_new, 0.0).astype(hout_ref.dtype)  # pad_packed zeros
        return h_next

    # Single VMEM writeback of the hidden state per chunk.
    h_scr[...] = lax.fori_loop(0, tt, step, h_scr[...], unroll=True)


# ----------------------------------------------------------------------------
# Full forward: embedding -> (dropout=id) -> fused gx + recurrence -> hoisted projection.
# ----------------------------------------------------------------------------
@functools.partial(jax.jit, static_argnames=("compute_dtype", "time_chunk"))
def decoder_gru_forward(tokens, lengths, h0, emb_table,
                        wih_t, whh_t, b_ih, b_hh, wproj_t, b_proj,
                        *, compute_dtype=jnp.float32, time_chunk=16):
    B, T = tokens.shape
    H = h0.shape[1]
    E = emb_table.shape[1]
    V = wproj_t.shape[1]

    Bp = _round_up(B, 8)        # sublane-dense batch
    Hp = _round_up(H, 128)      # lane-aligned per-gate width
    TT = time_chunk
    Tp = _round_up(T, TT)

    # Glue: pad batch/time, embedding gather stays in plain JAX.
    tok_p = jnp.pad(tokens, ((0, Bp - B), (0, Tp - T)))
    len_p = jnp.pad(lengths.astype(jnp.int32), ((0, Bp - B),)).reshape(Bp, 1)
    x = jnp.take(emb_table, tok_p, axis=0)                     # (Bp, Tp, E)
    # TODO(synk): nn.Dropout is identity here (eval mode).
    x = jnp.transpose(x, (1, 0, 2)).astype(compute_dtype)      # (Tp, Bp, E) time-major

    # Re-lay GRU weights so each gate (r|z|n) occupies a lane-aligned Hp-wide slot,
    # pre-cast matmul operands to compute_dtype (biases / gate math stay f32).
    def pad_gates_cols(w):                                     # (..., 3H) -> (..., 3Hp)
        parts = [w[..., g * H:(g + 1) * H] for g in range(3)]
        parts = [jnp.pad(p, [(0, 0)] * (w.ndim - 1) + [(0, Hp - H)]) for p in parts]
        return jnp.concatenate(parts, axis=-1)

    wih_p = pad_gates_cols(wih_t).astype(compute_dtype)                                # (E, 3Hp)
    whh_p = jnp.pad(pad_gates_cols(whh_t), ((0, Hp - H), (0, 0))).astype(compute_dtype)  # (Hp, 3Hp)
    bih_p = pad_gates_cols(b_ih).astype(jnp.float32)                                   # (1, 3Hp)
    bhh_p = pad_gates_cols(b_hh).astype(jnp.float32)                                   # (1, 3Hp)
    h0_p = jnp.pad(h0, ((0, Bp - B), (0, Hp - H))).astype(jnp.float32)                 # (Bp, Hp)
    wproj_p = jnp.pad(wproj_t, ((0, Hp - H), (0, 0)))                                  # (Hp, V)

    # Explicit VMEM budget for the recurrence (double-buffered blocks + scratch), with slack.
    cb = jnp.dtype(compute_dtype).itemsize
    rec_need = (
        2 * TT * Bp * E * cb                # x chunk (pipelined)
        + 2 * TT * Bp * Hp * cb             # h_out chunk (pipelined)
        + 2 * (E + Hp) * 3 * Hp * cb        # W_ih^T + W_hh^T (resident)
        + 2 * 2 * (3 * Hp) * 4              # biases (f32)
        + 2 * (Bp * Hp * 4 + Bp * 4)        # h0 + lengths
        + Bp * Hp * 4                       # h scratch
        + TT * Bp * 3 * Hp * 4              # gx scratch
    )
    rec_vmem_limit = int(min(max(2 * rec_need, 16 * 1024 * 1024), 64 * 1024 * 1024))

    # 1) Sequential recurrence, TT timesteps per grid step, fused input-gate matmul.
    h_out = pl.pallas_call(
        functools.partial(_gru_recurrence_kernel, tt=TT, bp=Bp, hp=Hp,
                          compute_dtype=compute_dtype),
        out_shape=jax.ShapeDtypeStruct((Tp, Bp, Hp), compute_dtype),
        grid_spec=pltpu.PrefetchScalarGridSpec(
            num_scalar_prefetch=0,
            grid=(Tp // TT,),
            in_specs=[
                pl.BlockSpec((TT, Bp, E), lambda c: (c, 0, 0)),   # X chunk (pipelined)
                pl.BlockSpec((Bp, 1), lambda c: (0, 0)),          # lengths (resident)
                pl.BlockSpec((Bp, Hp), lambda c: (0, 0)),         # h0
                pl.BlockSpec((E, 3 * Hp), lambda c: (0, 0)),      # W_ih^T (compute_dtype)
                pl.BlockSpec((1, 3 * Hp), lambda c: (0, 0)),      # b_ih (f32)
                pl.BlockSpec((Hp, 3 * Hp), lambda c: (0, 0)),     # W_hh^T (compute_dtype)
                pl.BlockSpec((1, 3 * Hp), lambda c: (0, 0)),      # b_hh (f32)
            ],
            out_specs=pl.BlockSpec((TT, Bp, Hp), lambda c: (c, 0, 0)),
            scratch_shapes=[pltpu.VMEM((Bp, Hp), jnp.float32),          # hidden state
                            pltpu.VMEM((TT, Bp, 3 * Hp), jnp.float32)], # chunk gx
        ),
        compiler_params=pltpu.CompilerParams(
            dimension_semantics=("arbitrary",),        # serial recurrence over time chunks
            vmem_limit_bytes=rec_vmem_limit),
    )(x, len_p, h0_p, wih_p, bih_p, whh_p, bhh_p)

    # 2) Hoisted vocabulary projection on VALID rows only, batch-major output.
    #    Transpose the cheap Hp-wide hidden tensor, never the V-wide logits tensor.
    h_valid = h_out[:T, :B, :]                                       # drop time/batch padding
    h_bt = jnp.transpose(h_valid, (1, 0, 2)).reshape(B * T, Hp)      # (B*T, Hp), batch-major
    logits = pallas_matmul_bias(h_bt, wproj_p, b_proj, compute_dtype=compute_dtype)
    return logits.reshape(B, T, V)                                   # (B, T, V), batch_first


# ----------------------------------------------------------------------------
# Pure-JAX reference of the same semantics (lax.scan over time, unpadded).
# ----------------------------------------------------------------------------
def reference_forward(tokens, lengths, h0, emb_table,
                      wih_t, whh_t, b_ih, b_hh, wproj_t, b_proj):
    B, T = tokens.shape
    H = h0.shape[1]
    x = jnp.take(emb_table, tokens, axis=0)
    x = jnp.transpose(x, (1, 0, 2))                                   # (T, B, E)
    mask = (jnp.arange(T)[:, None] < lengths[None, :]).astype(jnp.float32)[..., None]

    def step(h, inp):
        x_t, m_t = inp
        gx = x_t @ wih_t + b_ih
        gh = h @ whh_t + b_hh
        r = jax.nn.sigmoid(gx[:, :H] + gh[:, :H])
        z = jax.nn.sigmoid(gx[:, H:2 * H] + gh[:, H:2 * H])
        n = jnp.tanh(gx[:, 2 * H:] + r * gh[:, 2 * H:])
        h_new = (1.0 - z) * n + z * h
        h_upd = m_t * h_new + (1.0 - m_t) * h
        out_t = (m_t * h_new) @ wproj_t + b_proj
        return h_upd, out_t

    _, outs = lax.scan(step, h0, (x, mask))
    return jnp.transpose(outs, (1, 0, 2))


if __name__ == "__main__":
    # Small, deterministic problem consistent with the module's forward.
    B, T = 2, 8
    embed_dim = 32
    hidden = 32
    vocab = 128           # synthetic make_dict() vocabulary size

    key = jax.random.PRNGKey(0)
    keys = jax.random.split(key, 10)

    tokens = jax.random.randint(keys[0], (B, T), 0, vocab, dtype=jnp.int32)
    lengths = jnp.array([T, 5], dtype=jnp.int32)              # trg_length (max == T)

    enc_hidden = jax.random.normal(keys[1], (B, hidden), dtype=jnp.float32)  # squeezed [1,B,H]

    emb_table = jax.random.normal(keys[2], (vocab, embed_dim), dtype=jnp.float32)
    k = 1.0 / jnp.sqrt(hidden)
    wih_t = jax.random.uniform(keys[3], (embed_dim, 3 * hidden), jnp.float32, -k, k)   # W_ih^T
    whh_t = jax.random.uniform(keys[4], (hidden, 3 * hidden), jnp.float32, -k, k)      # W_hh^T
    b_ih = jax.random.uniform(keys[5], (1, 3 * hidden), jnp.float32, -k, k)
    b_hh = jax.random.uniform(keys[6], (1, 3 * hidden), jnp.float32, -k, k)
    wproj_t = jax.random.uniform(keys[7], (hidden, vocab), jnp.float32, -k, k)         # W_proj^T
    b_proj = jax.random.uniform(keys[8], (1, vocab), jnp.float32, -k, k)

    ref = reference_forward(tokens, lengths, enc_hidden, emb_table,
                            wih_t, whh_t, b_ih, b_hh, wproj_t, b_proj)
    ref = jax.block_until_ready(ref)

    # f32 path, chunk == T (exact check, no time padding).
    out = decoder_gru_forward(tokens, lengths, enc_hidden, emb_table,
                              wih_t, whh_t, b_ih, b_hh, wproj_t, b_proj,
                              compute_dtype=jnp.float32, time_chunk=8)
    out = jax.block_until_ready(out)
    assert out.shape == (B, T, vocab), out.shape
    assert jnp.allclose(out, ref, atol=1e-4, rtol=1e-4), float(jnp.max(jnp.abs(out - ref)))

    # f32 path, chunk > T (exercises time-padding / length masking; still exact).
    out_pad = decoder_gru_forward(tokens, lengths, enc_hidden, emb_table,
                                  wih_t, whh_t, b_ih, b_hh, wproj_t, b_proj,
                                  compute_dtype=jnp.float32, time_chunk=16)
    out_pad = jax.block_until_ready(out_pad)
    assert jnp.allclose(out_pad, ref, atol=1e-4, rtol=1e-4), \
        float(jnp.max(jnp.abs(out_pad - ref)))

    # bf16 matmul-operand path (MXU-native on v6e/v7x); gate math / hidden state stay f32.
    out_bf16 = decoder_gru_forward(tokens, lengths, enc_hidden, emb_table,
                                   wih_t, whh_t, b_ih, b_hh, wproj_t, b_proj,
                                   compute_dtype=jnp.bfloat16, time_chunk=16)
    out_bf16 = jax.block_until_ready(out_bf16)
    assert jnp.allclose(out_bf16, ref, atol=1e-1, rtol=1e-1), \
        float(jnp.max(jnp.abs(out_bf16 - ref)))

    print("KERNEL_OK")
</pallas_src>

<mosaic_0001>
module attributes {stable_mosaic.version = 11 : i64} {
  func.func @_matmul_bias_kernel(%arg0: i32, %arg1: i32, %arg2: memref<16x128xf32, #tpu.memory_space<vmem>>, %arg3: memref<128x128xf32, #tpu.memory_space<vmem>>, %arg4: memref<1x128xf32, #tpu.memory_space<vmem>>, %arg5: memref<16x128xf32, #tpu.memory_space<vmem>>) attributes {dimension_semantics = [#tpu.dimension_semantics<parallel>, #tpu.dimension_semantics<parallel>], iteration_bounds = array<i64: 1, 1>, scalar_prefetch = 0 : i64, scratch_operands = 0 : i64, tpu.core_type = #tpu.core_type<tc>, window_params = [{transform_indices = @transform_0, window_bounds = array<i64: 16, 128>}, {transform_indices = @transform_1, window_bounds = array<i64: 128, 128>}, {transform_indices = @transform_2, window_bounds = array<i64: 1, 128>}, {transform_indices = @transform_3, window_bounds = array<i64: 16, 128>}]} {
    %c0 = arith.constant 0 : index
    %c0_0 = arith.constant 0 : index
    %0 = vector.load %arg2[%c0, %c0_0] : memref<16x128xf32, #tpu.memory_space<vmem>>, vector<16x128xf32>
    %c0_1 = arith.constant 0 : index
    %c0_2 = arith.constant 0 : index
    %1 = vector.load %arg3[%c0_1, %c0_2] : memref<128x128xf32, #tpu.memory_space<vmem>>, vector<128x128xf32>
    %cst = arith.constant dense<0.000000e+00> : vector<16x128xf32>
    %2 = tpu.matmul %0, %1, %cst {dimension_numbers = #tpu.dot_dimension_numbers<[1], [0], [0], [1], [0, 0, 1, 1], [], []>} : vector<16x128xf32>, vector<128x128xf32>, vector<16x128xf32> -> vector<16x128xf32>
    %c0_3 = arith.constant 0 : index
    %c0_4 = arith.constant 0 : index
    %3 = vector.load %arg4[%c0_3, %c0_4] : memref<1x128xf32, #tpu.memory_space<vmem>>, vector<1x128xf32>
    %4 = vector.broadcast %3 : vector<1x128xf32> to vector<16x128xf32>
    %5 = arith.addf %2, %4 : vector<16x128xf32>
    %c0_5 = arith.constant 0 : index
    %c0_6 = arith.constant 0 : index
    %6 = vector.load %arg5[%c0_5, %c0_6] : memref<16x128xf32, #tpu.memory_space<vmem>>, vector<16x128xf32>
    tpu.vector_store %arg5[%c0_5, %c0_6], %5 {strides = array<i32>} : memref<16x128xf32, #tpu.memory_space<vmem>>, vector<16x128xf32>,
    return
  }
  func.func @transform_0(%arg0: i32, %arg1: i32) -> (i32, i32) {
    %c0_i32 = arith.constant 0 : i32
    %c0_i32_0 = arith.constant 0 : i32
    return %arg0, %c0_i32 : i32, i32
  }
  func.func @transform_1(%arg0: i32, %arg1: i32) -> (i32, i32) {
    %c0_i32 = arith.constant 0 : i32
    %c0_i32_0 = arith.constant 0 : i32
    return %c0_i32, %arg1 : i32, i32
  }
  func.func @transform_2(%arg0: i32, %arg1: i32) -> (i32, i32) {
    %c0_i32 = arith.constant 0 : i32
    %c0_i32_0 = arith.constant 0 : i32
    return %c0_i32, %arg1 : i32, i32
  }
  func.func @transform_3(%arg0: i32, %arg1: i32) -> (i32, i32) {
    %c0_i32 = arith.constant 0 : i32
    return %arg0, %arg1 : i32, i32
  }
}

module attributes {stable_mosaic.version = 11 : i64} {
  func.func @_gru_recurrence_kernel(%arg0: i32, %arg1: memref<8x8x32xf32, #tpu.memory_space<vmem>>, %arg2: memref<8x1xi32, #tpu.memory_space<vmem>>, %arg3: memref<8x128xf32, #tpu.memory_space<vmem>>, %arg4: memref<32x384xf32, #tpu.memory_space<vmem>>, %arg5: memref<1x384xf32, #tpu.memory_space<vmem>>, %arg6: memref<128x384xf32, #tpu.memory_space<vmem>>, %arg7: memref<1x384xf32, #tpu.memory_space<vmem>>, %arg8: memref<8x8x128xf32, #tpu.memory_space<vmem>>, %arg9: memref<8x128xf32, #tpu.memory_space<vmem>>, %arg10: memref<8x8x384xf32, #tpu.memory_space<vmem>>) attributes {dimension_semantics = [#tpu.dimension_semantics<arbitrary>], iteration_bounds = array<i64: 1>, scalar_prefetch = 0 : i64, scratch_operands = 2 : i64, tpu.core_type = #tpu.core_type<tc>, window_params = [{transform_indices = @transform_0, window_bounds = array<i64: 8, 8, 32>}, {pipeline_mode = #tpu.pipeline_mode<synchronous>, transform_indices = @transform_1, window_bounds = array<i64: 8, 1>}, {pipeline_mode = #tpu.pipeline_mode<synchronous>, transform_indices = @transform_2, window_bounds = array<i64: 8, 128>}, {pipeline_mode = #tpu.pipeline_mode<synchronous>, transform_indices = @transform_3, window_bounds = array<i64: 32, 384>}, {pipeline_mode = #tpu.pipeline_mode<synchronous>, transform_indices = @transform_4, window_bounds = array<i64: 1, 384>}, {pipeline_mode = #tpu.pipeline_mode<synchronous>, transform_indices = @transform_5, window_bounds = array<i64: 128, 384>}, {pipeline_mode = #tpu.pipeline_mode<synchronous>, transform_indices = @transform_6, window_bounds = array<i64: 1, 384>}, {transform_indices = @transform_7, window_bounds = array<i64: 8, 8, 128>}]} {
    %c0_i32 = arith.constant 0 : i32
    %0 = arith.cmpi eq, %arg0, %c0_i32 : i32
    %1 = arith.extui %0 : i1 to i32
    %c0_i32_0 = arith.constant 0 : i32
    %2 = arith.cmpi ne, %1, %c0_i32_0 : i32
    scf.if %2 {
      %c0_93 = arith.constant 0 : index
      %c0_94 = arith.constant 0 : index
      %377 = vector.load %arg3[%c0_93, %c0_94] : memref<8x128xf32, #tpu.memory_space<vmem>>, vector<8x128xf32>
      %c0_95 = arith.constant 0 : index
      %c0_96 = arith.constant 0 : index
      %378 = vector.load %arg9[%c0_95, %c0_96] : memref<8x128xf32, #tpu.memory_space<vmem>>, vector<8x128xf32>
      tpu.vector_store %arg9[%c0_95, %c0_96], %377 {strides = array<i32>} : memref<8x128xf32, #tpu.memory_space<vmem>>, vector<8x128xf32>,
    } else {
    }
    %c0 = arith.constant 0 : index
    %c0_1 = arith.constant 0 : index
    %c0_2 = arith.constant 0 : index
    %3 = vector.load %arg1[%c0, %c0_1, %c0_2] : memref<8x8x32xf32, #tpu.memory_space<vmem>>, vector<8x8x32xf32>
    %4 = vector.shape_cast %3 : vector<8x8x32xf32> to vector<64x32xf32>
    %c0_3 = arith.constant 0 : index
    %c0_4 = arith.constant 0 : index
    %5 = vector.load %arg4[%c0_3, %c0_4] : memref<32x384xf32, #tpu.memory_space<vmem>>, vector<32x384xf32>
    %cst = arith.constant dense<0.000000e+00> : vector<64x384xf32>
    %6 = tpu.matmul %4, %5, %cst {dimension_numbers = #tpu.dot_dimension_numbers<[1], [0], [0], [1], [0, 0, 1, 1], [], []>} : vector<64x32xf32>, vector<32x384xf32>, vector<64x384xf32> -> vector<64x384xf32>
    %c0_5 = arith.constant 0 : index
    %c0_6 = arith.constant 0 : index
    %7 = vector.load %arg5[%c0_5, %c0_6] : memref<1x384xf32, #tpu.memory_space<vmem>>, vector<1x384xf32>
    %8 = vector.broadcast %7 : vector<1x384xf32> to vector<64x384xf32>
    %9 = arith.addf %6, %8 : vector<64x384xf32>
    %10 = vector.shape_cast %9 : vector<64x384xf32> to vector<8x8x384xf32>
    %c0_7 = arith.constant 0 : index
    %c0_8 = arith.constant 0 : index
    %c0_9 = arith.constant 0 : index
    %11 = vector.load %arg10[%c0_7, %c0_8, %c0_9] : memref<8x8x384xf32, #tpu.memory_space<vmem>>, vector<8x8x384xf32>
    tpu.vector_store %arg10[%c0_7, %c0_8, %c0_9], %10 {strides = array<i32>} : memref<8x8x384xf32, #tpu.memory_space<vmem>>, vector<8x8x384xf32>,
    %c0_10 = arith.constant 0 : index
    %c0_11 = arith.constant 0 : index
    %12 = vector.load %arg6[%c0_10, %c0_11] : memref<128x384xf32, #tpu.memory_space<vmem>>, vector<128x384xf32>
    %c0_12 = arith.constant 0 : index
    %c0_13 = arith.constant 0 : index
    %13 = vector.load %arg7[%c0_12, %c0_13] : memref<1x384xf32, #tpu.memory_space<vmem>>, vector<1x384xf32>
    %c0_14 = arith.constant 0 : index
    %c0_15 = arith.constant 0 : index
    %14 = vector.load %arg2[%c0_14, %c0_15] : memref<8x1xi32, #tpu.memory_space<vmem>>, vector<8x1xi32>
    %c0_16 = arith.constant 0 : index
    %c0_17 = arith.constant 0 : index
    %15 = vector.load %arg9[%c0_16, %c0_17] : memref<8x128xf32, #tpu.memory_space<vmem>>, vector<8x128xf32>
    %c0_i32_18 = arith.constant 0 : i32
    %c8_i32 = arith.constant 8 : i32
    %16 = arith.muli %arg0, %c8_i32 : i32
    %17 = arith.addi %16, %c0_i32_18 : i32
    %18 = arith.index_cast %c0_i32_18 : i32 to index
    %c0_19 = arith.constant 0 : index
    %c0_20 = arith.constant 0 : index
    %19 = vector.load %arg10[%18, %c0_19, %c0_20] : memref<8x8x384xf32, #tpu.memory_space<vmem>>, vector<1x8x384xf32>
    %20 = vector.shape_cast %19 : vector<1x8x384xf32> to vector<8x384xf32>
    %cst_21 = arith.constant dense<0.000000e+00> : vector<8x384xf32>
    %21 = tpu.matmul %15, %12, %cst_21 {dimension_numbers = #tpu.dot_dimension_numbers<[1], [0], [0], [1], [0, 0, 1, 1], [], []>} : vector<8x128xf32>, vector<128x384xf32>, vector<8x384xf32> -> vector<8x384xf32>
    %22 = vector.broadcast %13 : vector<1x384xf32> to vector<8x384xf32>
    %23 = arith.addf %21, %22 : vector<8x384xf32>
    %24 = vector.extract_strided_slice %20 {offsets = [0, 0], sizes = [8, 128], strides = [1, 1]} : vector<8x384xf32> to vector<8x128xf32>
    %25 = vector.extract_strided_slice %23 {offsets = [0, 0], sizes = [8, 128], strides = [1, 1]} : vector<8x384xf32> to vector<8x128xf32>
    %26 = arith.addf %24, %25 : vector<8x128xf32>
    %27 = arith.negf %26 : vector<8x128xf32>
    %28 = math.exp %27 : vector<8x128xf32>
    %cst_22 = arith.constant 1.000000e+00 : f32
    %29 = vector.broadcast %cst_22 : f32 to vector<8x128xf32>
    %30 = arith.addf %29, %28 : vector<8x128xf32>
    %31 = arith.divf %29, %30 : vector<8x128xf32>
    %32 = vector.extract_strided_slice %20 {offsets = [0, 128], sizes = [8, 128], strides = [1, 1]} : vector<8x384xf32> to vector<8x128xf32>
    %33 = vector.extract_strided_slice %23 {offsets = [0, 128], sizes = [8, 128], strides = [1, 1]} : vector<8x384xf32> to vector<8x128xf32>
    %34 = arith.addf %32, %33 : vector<8x128xf32>
    %35 = arith.negf %34 : vector<8x128xf32>
    %36 = math.exp %35 : vector<8x128xf32>
    %cst_23 = arith.constant 1.000000e+00 : f32
    %37 = vector.broadcast %cst_23 : f32 to vector<8x128xf32>
    %38 = arith.addf %37, %36 : vector<8x128xf32>
    %39 = arith.divf %37, %38 : vector<8x128xf32>
    %40 = vector.extract_strided_slice %20 {offsets = [0, 256], sizes = [8, 128], strides = [1, 1]} : vector<8x384xf32> to vector<8x128xf32>
    %41 = vector.extract_strided_slice %23 {offsets = [0, 256], sizes = [8, 128], strides = [1, 1]} : vector<8x384xf32> to vector<8x128xf32>
    %42 = arith.mulf %31, %41 : vector<8x128xf32>
    %43 = arith.addf %40, %42 : vector<8x128xf32>
    %44 = math.tanh %43 : vector<8x128xf32>
    %45 = arith.subf %15, %44 : vector<8x128xf32>
    %46 = arith.mulf %39, %45 : vector<8x128xf32>
    %47 = arith.addf %44, %46 : vector<8x128xf32>
    %48 = vector.broadcast %17 : i32 to vector<8x1xi32>
    %49 = arith.cmpi slt, %48, %14 : vector<8x1xi32>
    %50 = vector.shape_cast %49 : vector<8x1xi1> to vector<8x1xi1>
    %51 = vector.broadcast %50 : vector<8x1xi1> to vector<8x128xi1>
    %52 = arith.select %51, %47, %15 : vector<8x128xi1>, vector<8x128xf32>
    %cst_24 = arith.constant 0.000000e+00 : f32
    %53 = vector.shape_cast %49 : vector<8x1xi1> to vector<8x1xi1>
    %54 = vector.broadcast %53 : vector<8x1xi1> to vector<8x128xi1>
    %55 = vector.broadcast %cst_24 : f32 to vector<8x128xf32>
    %56 = arith.select %54, %47, %55 : vector<8x128xi1>, vector<8x128xf32>
    %57 = arith.index_cast %c0_i32_18 : i32 to index
    %c0_25 = arith.constant 0 : index
    %c0_26 = arith.constant 0 : index
    %58 = vector.load %arg8[%57, %c0_25, %c0_26] : memref<8x8x128xf32, #tpu.memory_space<vmem>>, vector<1x8x128xf32>
    %59 = vector.shape_cast %58 : vector<1x8x128xf32> to vector<8x128xf32>
    %60 = vector.shape_cast %56 : vector<8x128xf32> to vector<1x8x128xf32>
    tpu.vector_store %arg8[%57, %c0_25, %c0_26], %60 {strides = array<i32>} : memref<8x8x128xf32, #tpu.memory_space<vmem>>, vector<1x8x128xf32>,
    %c1_i32 = arith.constant 1 : i32
    %c8_i32_27 = arith.constant 8 : i32
    %61 = arith.muli %arg0, %c8_i32_27 : i32
    %62 = arith.addi %61, %c1_i32 : i32
    %63 = arith.index_cast %c1_i32 : i32 to index
    %c0_28 = arith.constant 0 : index
    %c0_29 = arith.constant 0 : index
    %64 = vector.load %arg10[%63, %c0_28, %c0_29] : memref<8x8x384xf32, #tpu.memory_space<vmem>>, vector<1x8x384xf32>
    %65 = vector.shape_cast %64 : vector<1x8x384xf32> to vector<8x384xf32>
    %cst_30 = arith.constant dense<0.000000e+00> : vector<8x384xf32>
    %66 = tpu.matmul %52, %12, %cst_30 {dimension_numbers = #tpu.dot_dimension_numbers<[1], [0], [0], [1], [0, 0, 1, 1], [], []>} : vector<8x128xf32>, vector<128x384xf32>, vector<8x384xf32> -> vector<8x384xf32>
    %67 = vector.broadcast %13 : vector<1x384xf32> to vector<8x384xf32>
    %68 = arith.addf %66, %67 : vector<8x384xf32>
    %69 = vector.extract_strided_slice %65 {offsets = [0, 0], sizes = [8, 128], strides = [1, 1]} : vector<8x384xf32> to vector<8x128xf32>
    %70 = vector.extract_strided_slice %68 {offsets = [0, 0], sizes = [8, 128], strides = [1, 1]} : vector<8x384xf32> to vector<8x128xf32>
    %71 = arith.addf %69, %70 : vector<8x128xf32>
    %72 = arith.negf %71 : vector<8x128xf32>
    %73 = math.exp %72 : vector<8x128xf32>
    %cst_31 = arith.constant 1.000000e+00 : f32
    %74 = vector.broadcast %cst_31 : f32 to vector<8x128xf32>
    %75 = arith.addf %74, %73 : vector<8x128xf32>
    %76 = arith.divf %74, %75 : vector<8x128xf32>
    %77 = vector.extract_strided_slice %65 {offsets = [0, 128], sizes = [8, 128], strides = [1, 1]} : vector<8x384xf32> to vector<8x128xf32>
    %78 = vector.extract_strided_slice %68 {offsets = [0, 128], sizes = [8, 128], strides = [1, 1]} : vector<8x384xf32> to vector<8x128xf32>
    %79 = arith.addf %77, %78 : vector<8x128xf32>
    %80 = arith.negf %79 : vector<8x128xf32>
    %81 = math.exp %80 : vector<8x128xf32>
    %cst_32 = arith.constant 1.000000e+00 : f32
    %82 = vector.broadcast %cst_32 : f32 to vector<8x128xf32>
    %83 = arith.addf %82, %81 : vector<8x128xf32>
    %84 = arith.divf %82, %83 : vector<8x128xf32>
    %85 = vector.extract_strided_slice %65 {offsets = [0, 256], sizes = [8, 128], strides = [1, 1]} : vector<8x384xf32> to vector<8x128xf32>
    %86 = vector.extract_strided_slice %68 {offsets = [0, 256], sizes = [8, 128], strides = [1, 1]} : vector<8x384xf32> to vector<8x128xf32>
    %87 = arith.mulf %76, %86 : vector<8x128xf32>
    %88 = arith.addf %85, %87 : vector<8x128xf32>
    %89 = math.tanh %88 : vector<8x128xf32>
    %90 = arith.subf %52, %89 : vector<8x128xf32>
    %91 = arith.mulf %84, %90 : vector<8x128xf32>
    %92 = arith.addf %89, %91 : vector<8x128xf32>
    %93 = vector.broadcast %62 : i32 to vector<8x1xi32>
    %94 = arith.cmpi slt, %93, %14 : vector<8x1xi32>
    %95 = vector.shape_cast %94 : vector<8x1xi1> to vector<8x1xi1>
    %96 = vector.broadcast %95 : vector<8x1xi1> to vector<8x128xi1>
    %97 = arith.select %96, %92, %52 : vector<8x128xi1>, vector<8x128xf32>
    %cst_33 = arith.constant 0.000000e+00 : f32
    %98 = vector.shape_cast %94 : vector<8x1xi1> to vector<8x1xi1>
    %99 = vector.broadcast %98 : vector<8x1xi1> to vector<8x128xi1>
    %100 = vector.broadcast %cst_33 : f32 to vector<8x128xf32>
    %101 = arith.select %99, %92, %100 : vector<8x128xi1>, vector<8x128xf32>
    %102 = arith.index_cast %c1_i32 : i32 to index
    %c0_34 = arith.constant 0 : index
    %c0_35 = arith.constant 0 : index
    %103 = vector.load %arg8[%102, %c0_34, %c0_35] : memref<8x8x128xf32, #tpu.memory_space<vmem>>, vector<1x8x128xf32>
    %104 = vector.shape_cast %103 : vector<1x8x128xf32> to vector<8x128xf32>
    %105 = vector.shape_cast %101 : vector<8x128xf32> to vector<1x8x128xf32>
    tpu.vector_store %arg8[%102, %c0_34, %c0_35], %105 {strides = array<i32>} : memref<8x8x128xf32, #tpu.memory_space<vmem>>, vector<1x8x128xf32>,
    %c2_i32 = arith.constant 2 : i32
    %c8_i32_36 = arith.constant 8 : i32
    %106 = arith.muli %arg0, %c8_i32_36 : i32
    %107 = arith.addi %106, %c2_i32 : i32
    %108 = arith.index_cast %c2_i32 : i32 to index
    %c0_37 = arith.constant 0 : index
    %c0_38 = arith.constant 0 : index
    %109 = vector.load %arg10[%108, %c0_37, %c0_38] : memref<8x8x384xf32, #tpu.memory_space<vmem>>, vector<1x8x384xf32>
    %110 = vector.shape_cast %109 : vector<1x8x384xf32> to vector<8x384xf32>
    %cst_39 = arith.constant dense<0.000000e+00> : vector<8x384xf32>
    %111 = tpu.matmul %97, %12, %cst_39 {dimension_numbers = #tpu.dot_dimension_numbers<[1], [0], [0], [1], [0, 0, 1, 1], [], []>} : vector<8x128xf32>, vector<128x384xf32>, vector<8x384xf32> -> vector<8x384xf32>
    %112 = vector.broadcast %13 : vector<1x384xf32> to vector<8x384xf32>
    %113 = arith.addf %111, %112 : vector<8x384xf32>
    %114 = vector.extract_strided_slice %110 {offsets = [0, 0], sizes = [8, 128], strides = [1, 1]} : vector<8x384xf32> to vector<8x128xf32>
    %115 = vector.extract_strided_slice %113 {offsets = [0, 0], sizes = [8, 128], strides = [1, 1]} : vector<8x384xf32> to vector<8x128xf32>
    %116 = arith.addf %114, %115 : vector<8x128xf32>
    %117 = arith.negf %116 : vector<8x128xf32>
    %118 = math.exp %117 : vector<8x128xf32>
    %cst_40 = arith.constant 1.000000e+00 : f32
    %119 = vector.broadcast %cst_40 : f32 to vector<8x128xf32>
    %120 = arith.addf %119, %118 : vector<8x128xf32>
    %121 = arith.divf %119, %120 : vector<8x128xf32>
    %122 = vector.extract_strided_slice %110 {offsets = [0, 128], sizes = [8, 128], strides = [1, 1]} : vector<8x384xf32> to vector<8x128xf32>
    %123 = vector.extract_strided_slice %113 {offsets = [0, 128], sizes = [8, 128], strides = [1, 1]} : vector<8x384xf32> to vector<8x128xf32>
    %124 = arith.addf %122, %123 : vector<8x128xf32>
    %125 = arith.negf %124 : vector<8x128xf32>
    %126 = math.exp %125 : vector<8x128xf32>
    %cst_41 = arith.constant 1.000000e+00 : f32
    %127 = vector.broadcast %cst_41 : f32 to vector<8x128xf32>
    %128 = arith.addf %127, %126 : vector<8x128xf32>
    %129 = arith.divf %127, %128 : vector<8x128xf32>
    %130 = vector.extract_strided_slice %110 {offsets = [0, 256], sizes = [8, 128], strides = [1, 1]} : vector<8x384xf32> to vector<8x128xf32>
    %131 = vector.extract_strided_slice %113 {offsets = [0, 256], sizes = [8, 128], strides = [1, 1]} : vector<8x384xf32> to vector<8x128xf32>
    %132 = arith.mulf %121, %131 : vector<8x128xf32>
    %133 = arith.addf %130, %132 : vector<8x128xf32>
    %134 = math.tanh %133 : vector<8x128xf32>
    %135 = arith.subf %97, %134 : vector<8x128xf32>
    %136 = arith.mulf %129, %135 : vector<8x128xf32>
    %137 = arith.addf %134, %136 : vector<8x128xf32>
    %138 = vector.broadcast %107 : i32 to vector<8x1xi32>
    %139 = arith.cmpi slt, %138, %14 : vector<8x1xi32>
    %140 = vector.shape_cast %139 : vector<8x1xi1> to vector<8x1xi1>
    %141 = vector.broadcast %140 : vector<8x1xi1> to vector<8x128xi1>
    %142 = arith.select %141, %137, %97 : vector<8x128xi1>, vector<8x128xf32>
    %cst_42 = arith.constant 0.000000e+00 : f32
    %143 = vector.shape_cast %139 : vector<8x1xi1> to vector<8x1xi1>
    %144 = vector.broadcast %143 : vector<8x1xi1> to vector<8x128xi1>
    %145 = vector.broadcast %cst_42 : f32 to vector<8x128xf32>
    %146 = arith.select %144, %137, %145 : vector<8x128xi1>, vector<8x128xf32>
    %147 = arith.index_cast %c2_i32 : i32 to index
    %c0_43 = arith.constant 0 : index
    %c0_44 = arith.constant 0 : index
    %148 = vector.load %arg8[%147, %c0_43, %c0_44] : memref<8x8x128xf32, #tpu.memory_space<vmem>>, vector<1x8x128xf32>
    %149 = vector.shape_cast %148 : vector<1x8x128xf32> to vector<8x128xf32>
    %150 = vector.shape_cast %146 : vector<8x128xf32> to vector<1x8x128xf32>
    tpu.vector_store %arg8[%147, %c0_43, %c0_44], %150 {strides = array<i32>} : memref<8x8x128xf32, #tpu.memory_space<vmem>>, vector<1x8x128xf32>,
    %c3_i32 = arith.constant 3 : i32
    %c8_i32_45 = arith.constant 8 : i32
    %151 = arith.muli %arg0, %c8_i32_45 : i32
    %152 = arith.addi %151, %c3_i32 : i32
    %153 = arith.index_cast %c3_i32 : i32 to index
    %c0_46 = arith.constant 0 : index
    %c0_47 = arith.constant 0 : index
    %154 = vector.load %arg10[%153, %c0_46, %c0_47] : memref<8x8x384xf32, #tpu.memory_space<vmem>>, vector<1x8x384xf32>
    %155 = vector.shape_cast %154 : vector<1x8x384xf32> to vector<8x384xf32>
    %cst_48 = arith.constant dense<0.000000e+00> : vector<8x384xf32>
    %156 = tpu.matmul %142, %12, %cst_48 {dimension_numbers = #tpu.dot_dimension_numbers<[1], [0], [0], [1], [0, 0, 1, 1], [], []>} : vector<8x128xf32>, vector<128x384xf32>, vector<8x384xf32> -> vector<8x384xf32>
    %157 = vector.broadcast %13 : vector<1x384xf32> to vector<8x384xf32>
    %158 = arith.addf %156, %157 : vector<8x384xf32>
    %159 = vector.extract_strided_slice %155 {offsets = [0, 0], sizes = [8, 128], strides = [1, 1]} : vector<8x384xf32> to vector<8x128xf32>
    %160 = vector.extract_strided_slice %158 {offsets = [0, 0], sizes = [8, 128], strides = [1, 1]} : vector<8x384xf32> to vector<8x128xf32>
    %161 = arith.addf %159, %160 : vector<8x128xf32>
    %162 = arith.negf %161 : vector<8x128xf32>
    %163 = math.exp %162 : vector<8x128xf32>
    %cst_49 = arith.constant 1.000000e+00 : f32
    %164 = vector.broadcast %cst_49 : f32 to vector<8x128xf32>
    %165 = arith.addf %164, %163 : vector<8x128xf32>
    %166 = arith.divf %164, %165 : vector<8x128xf32>
    %167 = vector.extract_strided_slice %155 {offsets = [0, 128], sizes = [8, 128], strides = [1, 1]} : vector<8x384xf32> to vector<8x128xf32>
    %168 = vector.extract_strided_slice %158 {offsets = [0, 128], sizes = [8, 128], strides = [1, 1]} : vector<8x384xf32> to vector<8x128xf32>
    %169 = arith.addf %167, %168 : vector<8x128xf32>
    %170 = arith.negf %169 : vector<8x128xf32>
    %171 = math.exp %170 : vector<8x128xf32>
    %cst_50 = arith.constant 1.000000e+00 : f32
    %172 = vector.broadcast %cst_50 : f32 to vector<8x128xf32>
    %173 = arith.addf %172, %171 : vector<8x128xf32>
    %174 = arith.divf %172, %173 : vector<8x128xf32>
    %175 = vector.extract_strided_slice %155 {offsets = [0, 256], sizes = [8, 128], strides = [1, 1]} : vector<8x384xf32> to vector<8x128xf32>
    %176 = vector.extract_strided_slice %158 {offsets = [0, 256], sizes = [8, 128], strides = [1, 1]} : vector<8x384xf32> to vector<8x128xf32>
    %177 = arith.mulf %166, %176 : vector<8x128xf32>
    %178 = arith.addf %175, %177 : vector<8x128xf32>
    %179 = math.tanh %178 : vector<8x128xf32>
    %180 = arith.subf %142, %179 : vector<8x128xf32>
    %181 = arith.mulf %174, %180 : vector<8x128xf32>
    %182 = arith.addf %179, %181 : vector<8x128xf32>
    %183 = vector.broadcast %152 : i32 to vector<8x1xi32>
    %184 = arith.cmpi slt, %183, %14 : vector<8x1xi32>
    %185 = vector.shape_cast %184 : vector<8x1xi1> to vector<8x1xi1>
    %186 = vector.broadcast %185 : vector<8x1xi1> to vector<8x128xi1>
    %187 = arith.select %186, %182, %142 : vector<8x128xi1>, vector<8x128xf32>
    %cst_51 = arith.constant 0.000000e+00 : f32
    %188 = vector.shape_cast %184 : vector<8x1xi1> to vector<8x1xi1>
    %189 = vector.broadcast %188 : vector<8x1xi1> to vector<8x128xi1>
    %190 = vector.broadcast %cst_51 : f32 to vector<8x128xf32>
    %191 = arith.select %189, %182, %190 : vector<8x128xi1>, vector<8x128xf32>
    %192 = arith.index_cast %c3_i32 : i32 to index
    %c0_52 = arith.constant 0 : index
    %c0_53 = arith.constant 0 : index
    %193 = vector.load %arg8[%192, %c0_52, %c0_53] : memref<8x8x128xf32, #tpu.memory_space<vmem>>, vector<1x8x128xf32>
    %194 = vector.shape_cast %193 : vector<1x8x128xf32> to vector<8x128xf32>
    %195 = vector.shape_cast %191 : vector<8x128xf32> to vector<1x8x128xf32>
    tpu.vector_store %arg8[%192, %c0_52, %c0_53], %195 {strides = array<i32>} : memref<8x8x128xf32, #tpu.memory_space<vmem>>, vector<1x8x128xf32>,
    %c4_i32 = arith.constant 4 : i32
    %c8_i32_54 = arith.constant 8 : i32
    %196 = arith.muli %arg0, %c8_i32_54 : i32
    %197 = arith.addi %196, %c4_i32 : i32
    %198 = arith.index_cast %c4_i32 : i32 to index
    %c0_55 = arith.constant 0 : index
    %c0_56 = arith.constant 0 : index
    %199 = vector.load %arg10[%198, %c0_55, %c0_56] : memref<8x8x384xf32, #tpu.memory_space<vmem>>, vector<1x8x384xf32>
    %200 = vector.shape_cast %199 : vector<1x8x384xf32> to vector<8x384xf32>
    %cst_57 = arith.constant dense<0.000000e+00> : vector<8x384xf32>
    %201 = tpu.matmul %187, %12, %cst_57 {dimension_numbers = #tpu.dot_dimension_numbers<[1], [0], [0], [1], [0, 0, 1, 1], [], []>} : vector<8x128xf32>, vector<128x384xf32>, vector<8x384xf32> -> vector<8x384xf32>
    %202 = vector.broadcast %13 : vector<1x384xf32> to vector<8x384xf32>
    %203 = arith.addf %201, %202 : vector<8x384xf32>
    %204 = vector.extract_strided_slice %200 {offsets = [0, 0], sizes = [8, 128], strides = [1, 1]} : vector<8x384xf32> to vector<8x128xf32>
    %205 = vector.extract_strided_slice %203 {offsets = [0, 0], sizes = [8, 128], strides = [1, 1]} : vector<8x384xf32> to vector<8x128xf32>
    %206 = arith.addf %204, %205 : vector<8x128xf32>
    %207 = arith.negf %206 : vector<8x128xf32>
    %208 = math.exp %207 : vector<8x128xf32>
    %cst_58 = arith.constant 1.000000e+00 : f32
    %209 = vector.broadcast %cst_58 : f32 to vector<8x128xf32>
    %210 = arith.addf %209, %208 : vector<8x128xf32>
    %211 = arith.divf %209, %210 : vector<8x128xf32>
    %212 = vector.extract_strided_slice %200 {offsets = [0, 128], sizes = [8, 128], strides = [1, 1]} : vector<8x384xf32> to vector<8x128xf32>
    %213 = vector.extract_strided_slice %203 {offsets = [0, 128], sizes = [8, 128], strides = [1, 1]} : vector<8x384xf32> to vector<8x128xf32>
    %214 = arith.addf %212, %213 : vector<8x128xf32>
    %215 = arith.negf %214 : vector<8x128xf32>
    %216 = math.exp %215 : vector<8x128xf32>
    %cst_59 = arith.constant 1.000000e+00 : f32
    %217 = vector.broadcast %cst_59 : f32 to vector<8x128xf32>
    %218 = arith.addf %217, %216 : vector<8x128xf32>
    %219 = arith.divf %217, %218 : vector<8x128xf32>
    %220 = vector.extract_strided_slice %200 {offsets = [0, 256], sizes = [8, 128], strides = [1, 1]} : vector<8x384xf32> to vector<8x128xf32>
    %221 = vector.extract_strided_slice %203 {offsets = [0, 256], sizes = [8, 128], strides = [1, 1]} : vector<8x384xf32> to vector<8x128xf32>
    %222 = arith.mulf %211, %221 : vector<8x128xf32>
    %223 = arith.addf %220, %222 : vector<8x128xf32>
    %224 = math.tanh %223 : vector<8x128xf32>
    %225 = arith.subf %187, %224 : vector<8x128xf32>
    %226 = arith.mulf %219, %225 : vector<8x128xf32>
    %227 = arith.addf %224, %226 : vector<8x128xf32>
    %228 = vector.broadcast %197 : i32 to vector<8x1xi32>
    %229 = arith.cmpi slt, %228, %14 : vector<8x1xi32>
    %230 = vector.shape_cast %229 : vector<8x1xi1> to vector<8x1xi1>
    %231 = vector.broadcast %230 : vector<8x1xi1> to vector<8x128xi1>
    %232 = arith.select %231, %227, %187 : vector<8x128xi1>, vector<8x128xf32>
    %cst_60 = arith.constant 0.000000e+00 : f32
    %233 = vector.shape_cast %229 : vector<8x1xi1> to vector<8x1xi1>
    %234 = vector.broadcast %233 : vector<8x1xi1> to vector<8x128xi1>
    %235 = vector.broadcast %cst_60 : f32 to vector<8x128xf32>
    %236 = arith.select %234, %227, %235 : vector<8x128xi1>, vector<8x128xf32>
    %237 = arith.index_cast %c4_i32 : i32 to index
    %c0_61 = arith.constant 0 : index
    %c0_62 = arith.constant 0 : index
    %238 = vector.load %arg8[%237, %c0_61, %c0_62] : memref<8x8x128xf32, #tpu.memory_space<vmem>>, vector<1x8x128xf32>
    %239 = vector.shape_cast %238 : vector<1x8x128xf32> to vector<8x128xf32>
    %240 = vector.shape_cast %236 : vector<8x128xf32> to vector<1x8x128xf32>
    tpu.vector_store %arg8[%237, %c0_61, %c0_62], %240 {strides = array<i32>} : memref<8x8x128xf32, #tpu.memory_space<vmem>>, vector<1x8x128xf32>,
    %c5_i32 = arith.constant 5 : i32
    %c8_i32_63 = arith.constant 8 : i32
    %241 = arith.muli %arg0, %c8_i32_63 : i32
    %242 = arith.addi %241, %c5_i32 : i32
    %243 = arith.index_cast %c5_i32 : i32 to index
    %c0_64 = arith.constant 0 : index
    %c0_65 = arith.constant 0 : index
    %244 = vector.load %arg10[%243, %c0_64, %c0_65] : memref<8x8x384xf32, #tpu.memory_space<vmem>>, vector<1x8x384xf32>
    %245 = vector.shape_cast %244 : vector<1x8x384xf32> to vector<8x384xf32>
    %cst_66 = arith.constant dense<0.000000e+00> : vector<8x384xf32>
    %246 = tpu.matmul %232, %12, %cst_66 {dimension_numbers = #tpu.dot_dimension_numbers<[1], [0], [0], [1], [0, 0, 1, 1], [], []>} : vector<8x128xf32>, vector<128x384xf32>, vector<8x384xf32> -> vector<8x384xf32>
    %247 = vector.broadcast %13 : vector<1x384xf32> to vector<8x384xf32>
    %248 = arith.addf %246, %247 : vector<8x384xf32>
    %249 = vector.extract_strided_slice %245 {offsets = [0, 0], sizes = [8, 128], strides = [1, 1]} : vector<8x384xf32> to vector<8x128xf32>
    %250 = vector.extract_strided_slice %248 {offsets = [0, 0], sizes = [8, 128], strides = [1, 1]} : vector<8x384xf32> to vector<8x128xf32>
    %251 = arith.addf %249, %250 : vector<8x128xf32>
    %252 = arith.negf %251 : vector<8x128xf32>
    %253 = math.exp %252 : vector<8x128xf32>
    %cst_67 = arith.constant 1.000000e+00 : f32
    %254 = vector.broadcast %cst_67 : f32 to vector<8x128xf32>
    %255 = arith.addf %254, %253 : vector<8x128xf32>
    %256 = arith.divf %254, %255 : vector<8x128xf32>
    %257 = vector.extract_strided_slice %245 {offsets = [0, 128], sizes = [8, 128], strides = [1, 1]} : vector<8x384xf32> to vector<8x128xf32>
    %258 = vector.extract_strided_slice %248 {offsets = [0, 128], sizes = [8, 128], strides = [1, 1]} : vector<8x384xf32> to vector<8x128xf32>
    %259 = arith.addf %257, %258 : vector<8x128xf32>
    %260 = arith.negf %259 : vector<8x128xf32>
    %261 = math.exp %260 : vector<8x128xf32>
    %cst_68 = arith.constant 1.000000e+00 : f32
    %262 = vector.broadcast %cst_68 : f32 to vector<8x128xf32>
    %263 = arith.addf %262, %261 : vector<8x128xf32>
    %264 = arith.divf %262, %263 : vector<8x128xf32>
    %265 = vector.extract_strided_slice %245 {offsets = [0, 256], sizes = [8, 128], strides = [1, 1]} : vector<8x384xf32> to vector<8x128xf32>
    %266 = vector.extract_strided_slice %248 {offsets = [0, 256], sizes = [8, 128], strides = [1, 1]} : vector<8x384xf32> to vector<8x128xf32>
    %267 = arith.mulf %256, %266 : vector<8x128xf32>
    %268 = arith.addf %265, %267 : vector<8x128xf32>
    %269 = math.tanh %268 : vector<8x128xf32>
    %270 = arith.subf %232, %269 : vector<8x128xf32>
    %271 = arith.mulf %264, %270 : vector<8x128xf32>
    %272 = arith.addf %269, %271 : vector<8x128xf32>
    %273 = vector.broadcast %242 : i32 to vector<8x1xi32>
    %274 = arith.cmpi slt, %273, %14 : vector<8x1xi32>
    %275 = vector.shape_cast %274 : vector<8x1xi1> to vector<8x1xi1>
    %276 = vector.broadcast %275 : vector<8x1xi1> to vector<8x128xi1>
    %277 = arith.select %276, %272, %232 : vector<8x128xi1>, vector<8x128xf32>
    %cst_69 = arith.constant 0.000000e+00 : f32
    %278 = vector.shape_cast %274 : vector<8x1xi1> to vector<8x1xi1>
    %279 = vector.broadcast %278 : vector<8x1xi1> to vector<8x128xi1>
    %280 = vector.broadcast %cst_69 : f32 to vector<8x128xf32>
    %281 = arith.select %279, %272, %280 : vector<8x128xi1>, vector<8x128xf32>
    %282 = arith.index_cast %c5_i32 : i32 to index
    %c0_70 = arith.constant 0 : index
    %c0_71 = arith.constant 0 : index
    %283 = vector.load %arg8[%282, %c0_70, %c0_71] : memref<8x8x128xf32, #tpu.memory_space<vmem>>, vector<1x8x128xf32>
    %284 = vector.shape_cast %283 : vector<1x8x128xf32> to vector<8x128xf32>
    %285 = vector.shape_cast %281 : vector<8x128xf32> to vector<1x8x128xf32>
    tpu.vector_store %arg8[%282, %c0_70, %c0_71], %285 {strides = array<i32>} : memref<8x8x128xf32, #tpu.memory_space<vmem>>, vector<1x8x128xf32>,
    %c6_i32 = arith.constant 6 : i32
    %c8_i32_72 = arith.constant 8 : i32
    %286 = arith.muli %arg0, %c8_i32_72 : i32
    %287 = arith.addi %286, %c6_i32 : i32
    %288 = arith.index_cast %c6_i32 : i32 to index
    %c0_73 = arith.constant 0 : index
    %c0_74 = arith.constant 0 : index
    %289 = vector.load %arg10[%288, %c0_73, %c0_74] : memref<8x8x384xf32, #tpu.memory_space<vmem>>, vector<1x8x384xf32>
    %290 = vector.shape_cast %289 : vector<1x8x384xf32> to vector<8x384xf32>
    %cst_75 = arith.constant dense<0.000000e+00> : vector<8x384xf32>
    %291 = tpu.matmul %277, %12, %cst_75 {dimension_numbers = #tpu.dot_dimension_numbers<[1], [0], [0], [1], [0, 0, 1, 1], [], []>} : vector<8x128xf32>, vector<128x384xf32>, vector<8x384xf32> -> vector<8x384xf32>
    %292 = vector.broadcast %13 : vector<1x384xf32> to vector<8x384xf32>
    %293 = arith.addf %291, %292 : vector<8x384xf32>
    %294 = vector.extract_strided_slice %290 {offsets = [0, 0], sizes = [8, 128], strides = [1, 1]} : vector<8x384xf32> to vector<8x128xf32>
    %295 = vector.extract_strided_slice %293 {offsets = [0, 0], sizes = [8, 128], strides = [1, 1]} : vector<8x384xf32> to vector<8x128xf32>
    %296 = arith.addf %294, %295 : vector<8x128xf32>
    %297 = arith.negf %296 : vector<8x128xf32>
    %298 = math.exp %297 : vector<8x128xf32>
    %cst_76 = arith.constant 1.000000e+00 : f32
    %299 = vector.broadcast %cst_76 : f32 to vector<8x128xf32>
    %300 = arith.addf %299, %298 : vector<8x128xf32>
    %301 = arith.divf %299, %300 : vector<8x128xf32>
    %302 = vector.extract_strided_slice %290 {offsets = [0, 128], sizes = [8, 128], strides = [1, 1]} : vector<8x384xf32> to vector<8x128xf32>
    %303 = vector.extract_strided_slice %293 {offsets = [0, 128], sizes = [8, 128], strides = [1, 1]} : vector<8x384xf32> to vector<8x128xf32>
    %304 = arith.addf %302, %303 : vector<8x128xf32>
    %305 = arith.negf %304 : vector<8x128xf32>
    %306 = math.exp %305 : vector<8x128xf32>
    %cst_77 = arith.constant 1.000000e+00 : f32
    %307 = vector.broadcast %cst_77 : f32 to vector<8x128xf32>
    %308 = arith.addf %307, %306 : vector<8x128xf32>
    %309 = arith.divf %307, %308 : vector<8x128xf32>
    %310 = vector.extract_strided_slice %290 {offsets = [0, 256], sizes = [8, 128], strides = [1, 1]} : vector<8x384xf32> to vector<8x128xf32>
    %311 = vector.extract_strided_slice %293 {offsets = [0, 256], sizes = [8, 128], strides = [1, 1]} : vector<8x384xf32> to vector<8x128xf32>
    %312 = arith.mulf %301, %311 : vector<8x128xf32>
    %313 = arith.addf %310, %312 : vector<8x128xf32>
    %314 = math.tanh %313 : vector<8x128xf32>
    %315 = arith.subf %277, %314 : vector<8x128xf32>
    %316 = arith.mulf %309, %315 : vector<8x128xf32>
    %317 = arith.addf %314, %316 : vector<8x128xf32>
    %318 = vector.broadcast %287 : i32 to vector<8x1xi32>
    %319 = arith.cmpi slt, %318, %14 : vector<8x1xi32>
    %320 = vector.shape_cast %319 : vector<8x1xi1> to vector<8x1xi1>
    %321 = vector.broadcast %320 : vector<8x1xi1> to vector<8x128xi1>
    %322 = arith.select %321, %317, %277 : vector<8x128xi1>, vector<8x128xf32>
    %cst_78 = arith.constant 0.000000e+00 : f32
    %323 = vector.shape_cast %319 : vector<8x1xi1> to vector<8x1xi1>
    %324 = vector.broadcast %323 : vector<8x1xi1> to vector<8x128xi1>
    %325 = vector.broadcast %cst_78 : f32 to vector<8x128xf32>
    %326 = arith.select %324, %317, %325 : vector<8x128xi1>, vector<8x128xf32>
    %327 = arith.index_cast %c6_i32 : i32 to index
    %c0_79 = arith.constant 0 : index
    %c0_80 = arith.constant 0 : index
    %328 = vector.load %arg8[%327, %c0_79, %c0_80] : memref<8x8x128xf32, #tpu.memory_space<vmem>>, vector<1x8x128xf32>
    %329 = vector.shape_cast %328 : vector<1x8x128xf32> to vector<8x128xf32>
    %330 = vector.shape_cast %326 : vector<8x128xf32> to vector<1x8x128xf32>
    tpu.vector_store %arg8[%327, %c0_79, %c0_80], %330 {strides = array<i32>} : memref<8x8x128xf32, #tpu.memory_space<vmem>>, vector<1x8x128xf32>,
    %c7_i32 = arith.constant 7 : i32
    %c8_i32_81 = arith.constant 8 : i32
    %331 = arith.muli %arg0, %c8_i32_81 : i32
    %332 = arith.addi %331, %c7_i32 : i32
    %333 = arith.index_cast %c7_i32 : i32 to index
    %c0_82 = arith.constant 0 : index
    %c0_83 = arith.constant 0 : index
    %334 = vector.load %arg10[%333, %c0_82, %c0_83] : memref<8x8x384xf32, #tpu.memory_space<vmem>>, vector<1x8x384xf32>
    %335 = vector.shape_cast %334 : vector<1x8x384xf32> to vector<8x384xf32>
    %cst_84 = arith.constant dense<0.000000e+00> : vector<8x384xf32>
    %336 = tpu.matmul %322, %12, %cst_84 {dimension_numbers = #tpu.dot_dimension_numbers<[1], [0], [0], [1], [0, 0, 1, 1], [], []>} : vector<8x128xf32>, vector<128x384xf32>, vector<8x384xf32> -> vector<8x384xf32>
    %337 = vector.broadcast %13 : vector<1x384xf32> to vector<8x384xf32>
    %338 = arith.addf %336, %337 : vector<8x384xf32>
    %339 = vector.extract_strided_slice %335 {offsets = [0, 0], sizes = [8, 128], strides = [1, 1]} : vector<8x384xf32> to vector<8x128xf32>
    %340 = vector.extract_strided_slice %338 {offsets = [0, 0], sizes = [8, 128], strides = [1, 1]} : vector<8x384xf32> to vector<8x128xf32>
    %341 = arith.addf %339, %340 : vector<8x128xf32>
    %342 = arith.negf %341 : vector<8x128xf32>
    %343 = math.exp %342 : vector<8x128xf32>
    %cst_85 = arith.constant 1.000000e+00 : f32
    %344 = vector.broadcast %cst_85 : f32 to vector<8x128xf32>
    %345 = arith.addf %344, %343 : vector<8x128xf32>
    %346 = arith.divf %344, %345 : vector<8x128xf32>
    %347 = vector.extract_strided_slice %335 {offsets = [0, 128], sizes = [8, 128], strides = [1, 1]} : vector<8x384xf32> to vector<8x128xf32>
    %348 = vector.extract_strided_slice %338 {offsets = [0, 128], sizes = [8, 128], strides = [1, 1]} : vector<8x384xf32> to vector<8x128xf32>
    %349 = arith.addf %347, %348 : vector<8x128xf32>
    %350 = arith.negf %349 : vector<8x128xf32>
    %351 = math.exp %350 : vector<8x128xf32>
    %cst_86 = arith.constant 1.000000e+00 : f32
    %352 = vector.broadcast %cst_86 : f32 to vector<8x128xf32>
    %353 = arith.addf %352, %351 : vector<8x128xf32>
    %354 = arith.divf %352, %353 : vector<8x128xf32>
    %355 = vector.extract_strided_slice %335 {offsets = [0, 256], sizes = [8, 128], strides = [1, 1]} : vector<8x384xf32> to vector<8x128xf32>
    %356 = vector.extract_strided_slice %338 {offsets = [0, 256], sizes = [8, 128], strides = [1, 1]} : vector<8x384xf32> to vector<8x128xf32>
    %357 = arith.mulf %346, %356 : vector<8x128xf32>
    %358 = arith.addf %355, %357 : vector<8x128xf32>
    %359 = math.tanh %358 : vector<8x128xf32>
    %360 = arith.subf %322, %359 : vector<8x128xf32>
    %361 = arith.mulf %354, %360 : vector<8x128xf32>
    %362 = arith.addf %359, %361 : vector<8x128xf32>
    %363 = vector.broadcast %332 : i32 to vector<8x1xi32>
    %364 = arith.cmpi slt, %363, %14 : vector<8x1xi32>
    %365 = vector.shape_cast %364 : vector<8x1xi1> to vector<8x1xi1>
    %366 = vector.broadcast %365 : vector<8x1xi1> to vector<8x128xi1>
    %367 = arith.select %366, %362, %322 : vector<8x128xi1>, vector<8x128xf32>
    %cst_87 = arith.constant 0.000000e+00 : f32
    %368 = vector.shape_cast %364 : vector<8x1xi1> to vector<8x1xi1>
    %369 = vector.broadcast %368 : vector<8x1xi1> to vector<8x128xi1>
    %370 = vector.broadcast %cst_87 : f32 to vector<8x128xf32>
    %371 = arith.select %369, %362, %370 : vector<8x128xi1>, vector<8x128xf32>
    %372 = arith.index_cast %c7_i32 : i32 to index
    %c0_88 = arith.constant 0 : index
    %c0_89 = arith.constant 0 : index
    %373 = vector.load %arg8[%372, %c0_88, %c0_89] : memref<8x8x128xf32, #tpu.memory_space<vmem>>, vector<1x8x128xf32>
    %374 = vector.shape_cast %373 : vector<1x8x128xf32> to vector<8x128xf32>
    %375 = vector.shape_cast %371 : vector<8x128xf32> to vector<1x8x128xf32>
    tpu.vector_store %arg8[%372, %c0_88, %c0_89], %375 {strides = array<i32>} : memref<8x8x128xf32, #tpu.memory_space<vmem>>, vector<1x8x128xf32>,
    %c8_i32_90 = arith.constant 8 : i32
    %c0_91 = arith.constant 0 : index
    %c0_92 = arith.constant 0 : index
    %376 = vector.load %arg9[%c0_91, %c0_92] : memref<8x128xf32, #tpu.memory_space<vmem>>, vector<8x128xf32>
    tpu.vector_store %arg9[%c0_91, %c0_92], %367 {strides = array<i32>} : memref<8x128xf32, #tpu.memory_space<vmem>>, vector<8x128xf32>,
    return
  }
  func.func @transform_0(%arg0: i32) -> (i32, i32, i32) {
    %c0_i32 = arith.constant 0 : i32
    %c0_i32_0 = arith.constant 0 : i32
    %c0_i32_1 = arith.constant 0 : i32
    return %arg0, %c0_i32, %c0_i32_0 : i32, i32, i32
  }
  func.func @transform_1(%arg0: i32) -> (i32, i32) {
    %c0_i32 = arith.constant 0 : i32
    %c0_i32_0 = arith.constant 0 : i32
    %c0_i32_1 = arith.constant 0 : i32
    return %c0_i32, %c0_i32_0 : i32, i32
  }
  func.func @transform_2(%arg0: i32) -> (i32, i32) {
    %c0_i32 = arith.constant 0 : i32
    %c0_i32_0 = arith.constant 0 : i32
    %c0_i32_1 = arith.constant 0 : i32
    return %c0_i32, %c0_i32_0 : i32, i32
  }
  func.func @transform_3(%arg0: i32) -> (i32, i32) {
    %c0_i32 = arith.constant 0 : i32
    %c0_i32_0 = arith.constant 0 : i32
    %c0_i32_1 = arith.constant 0 : i32
    return %c0_i32, %c0_i32_0 : i32, i32
  }
  func.func @transform_4(%arg0: i32) -> (i32, i32) {
    %c0_i32 = arith.constant 0 : i32
    %c0_i32_0 = arith.constant 0 : i32
    %c0_i32_1 = arith.constant 0 : i32
    return %c0_i32, %c0_i32_0 : i32, i32
  }
  func.func @transform_5(%arg0: i32) -> (i32, i32) {
    %c0_i32 = arith.constant 0 : i32
    %c0_i32_0 = arith.constant 0 : i32
    %c0_i32_1 = arith.constant 0 : i32
    return %c0_i32, %c0_i32_0 : i32, i32
  }
  func.func @transform_6(%arg0: i32) -> (i32, i32) {
    %c0_i32 = arith.constant 0 : i32
    %c0_i32_0 = arith.constant 0 : i32
    %c0_i32_1 = arith.constant 0 : i32
    return %c0_i32, %c0_i32_0 : i32, i32
  }
  func.func @transform_7(%arg0: i32) -> (i32, i32, i32) {
    %c0_i32 = arith.constant 0 : i32
    %c0_i32_0 = arith.constant 0 : i32
    %c0_i32_1 = arith.constant 0 : i32
    return %arg0, %c0_i32, %c0_i32_0 : i32, i32, i32
  }
}

</mosaic_0001>

<llo_original>
// kernel: decoder_gru_forward.3
$region0: #{decoder_gru_forward.3}
  #allocation0 [shape = 'u32[]', space=smem, size = 0x4, offset = 0x4, fixed_abs, tag = 'smem constant byte address 0x4 - core index']
  #allocation1 [shape = 'u32[144,128]{1,0:T(1,128)}', space=vmem, size = 0x12000, scoped, tag = 'internal scratch']
  %s0 = inlined_call_operand.vmem [shape: f32[16,128], index: 0, kind: input, shape index: {}]
  %s1 = inlined_call_operand.vmem [shape: f32[128,128], index: 1, kind: input, shape index: {}]
  %s2 = inlined_call_operand.vmem [shape: f32[1,128], index: 2, kind: input, shape index: {}]
  %s3 = inlined_call_operand.hbm [shape: f32[16,128], index: 3, kind: output, shape index: {}]
  %s4 = sld [smem:[#allocation0]]
  $region22: #{decoder_gru_forward.3} parent=0
    _
  %s6 = ssub.s32 1, %s4
  %s7 = scalar_select 0, %s6, %s4
  $region1: #{decoder_gru_forward.3} parent=0
    #allocation2 [shape = 'u8[8192]{0}', space=vmem, size = 0x2000, scoped, tag = 'output window, operand 0, single buffered']
    #allocation3 [shape = 's32[1]{0}', space=sflag, size = 0x4, scoped, tag = 'scoped memory for decoder_gru_forward.3']
    %8 = vsyncpa [#allocation3], 0
    // Predicated region
    $region2: #{decoder_gru_forward.3} parent=1 // pred_check
      _
    $region3: #{decoder_gru_forward.3} parent=1 // pred_check_branch
      %10 = sbr.rel (0) target = $region5
    $region4: #{decoder_gru_forward.3} parent=1 // pred_region
      _
    $region5: #{decoder_gru_forward.3} parent=1 // pred_fallthru
      _
    // Predicated region
    $region6: #{decoder_gru_forward.3} parent=1 // pred_check
      _
    $region7: #{decoder_gru_forward.3} parent=1 // pred_check_branch
      %12 = sbr.rel (0) target = $region9
    $region8: #{decoder_gru_forward.3} parent=1 // pred_region
      _
    $region9: #{decoder_gru_forward.3} parent=1 // pred_fallthru
      _
    // Predicated region
    $region10: #{decoder_gru_forward.3} parent=1 // pred_check
      _
    $region11: #{decoder_gru_forward.3} parent=1 // pred_check_branch
      %14 = sbr.rel (0) target = $region13
    $region12: #{decoder_gru_forward.3} parent=1 // pred_region
      _
    $region13: #{decoder_gru_forward.3} parent=1 // pred_fallthru
      _
    %v15 = vld [vmem:[%s0] sm:$0xff]
    %v16 = vld [vmem:[%s0 + $0x8] sm:$0xff]
    %v17 = vld [vmem:[%s1] sm:$0xff]
    %v18 = vld [vmem:[%s1 + $0x8] sm:$0xff]
    %v19 = vld [vmem:[%s1 + $0x10] sm:$0xff]
    %v20 = vld [vmem:[%s1 + $0x18] sm:$0xff]
    %v21 = vld [vmem:[%s1 + $0x20] sm:$0xff]
    %v22 = vld [vmem:[%s1 + $0x28] sm:$0xff]
    %v23 = vld [vmem:[%s1 + $0x30] sm:$0xff]
    %v24 = vld [vmem:[%s1 + $0x38] sm:$0xff]
    %v25 = vld [vmem:[%s1 + $0x40] sm:$0xff]
    %v26 = vld [vmem:[%s1 + $0x48] sm:$0xff]
    %v27 = vld [vmem:[%s1 + $0x50] sm:$0xff]
    %v28 = vld [vmem:[%s1 + $0x58] sm:$0xff]
    %v29 = vld [vmem:[%s1 + $0x60] sm:$0xff]
    %v30 = vld [vmem:[%s1 + $0x68] sm:$0xff]
    %v31 = vld [vmem:[%s1 + $0x70] sm:$0xff]
    %v32 = vld [vmem:[%s1 + $0x78] sm:$0xff]
    %v33 = vld [vmem:[%s2] sm:$0x1]
    %v35 = vlaneseq
    %v36 = vshrl.u32 %v35, 7
    %v37 = vsub.s32 0, %v36
    %v38 = vrot.slane %v33, %v37
    %40 = vmatprep.subr.mxu0 0.0
    %41 = vmatpush1.msra.mxu0 %v17
    %42 = vmatprep.subr.mxu0 0.0
    %43 = vmatpush1.msra.mxu0 %v18
    %44 = vmatprep.subr.mxu0 0.0
    %45 = vmatpush1.msra.mxu0 %v19
    %46 = vmatprep.subr.mxu0 0.0
    %47 = vmatpush1.msra.mxu0 %v20
    %48 = vmatprep.subr.mxu0 0.0
    %49 = vmatpush1.msra.mxu0 %v21
    %50 = vmatprep.subr.mxu0 0.0
    %51 = vmatpush1.msra.mxu0 %v22
    %52 = vmatprep.subr.mxu0 0.0
    %53 = vmatpush1.msra.mxu0 %v23
    %54 = vmatprep.subr.mxu0 0.0
    %55 = vmatpush1.msra.mxu0 %v24
    %56 = vmatprep.subr.mxu0 0.0
    %57 = vmatpush1.msra.mxu0 %v25
    %58 = vmatprep.subr.mxu0 0.0
    %59 = vmatpush1.msra.mxu0 %v26
    %60 = vmatprep.subr.mxu0 0.0
    %61 = vmatpush1.msra.mxu0 %v27
    %62 = vmatprep.subr.mxu0 0.0
    %63 = vmatpush1.msra.mxu0 %v28
    %64 = vmatprep.subr.mxu0 0.0
    %65 = vmatpush1.msra.mxu0 %v29
    %66 = vmatprep.subr.mxu0 0.0
    %67 = vmatpush1.msra.mxu0 %v30
    %68 = vmatprep.subr.mxu0 0.0
    %69 = vmatpush1.msra.mxu0 %v31
    %70 = vmatprep.subr.mxu0 0.0
    %71 = vmatpush1.msra.mxu0 %v32
    %72 = vmatprep.subr.mxu0 0.0
    %73 = vmatpush1.msra.mxu0 0.0
    %74 = vmatprep.subr.mxu0 0.0
    %75 = vmatpush1.msra.mxu0 0.0
    %76 = vmatprep.subr.mxu0 0.0
    %77 = vmatpush1.msra.mxu0 0.0
    %78 = vmatprep.subr.mxu0 0.0
    %79 = vmatpush1.msra.mxu0 0.0
    %80 = vmatprep.subr.mxu0 0.0
    %81 = vmatpush1.msra.mxu0 0.0
    %82 = vmatprep.subr.mxu0 0.0
    %83 = vmatpush1.msra.mxu0 0.0
    %84 = vmatprep.subr.mxu0 0.0
    %85 = vmatpush1.msra.mxu0 0.0
    %86 = vmatprep.subr.mxu0 0.0
    %87 = vmatpush1.msra.mxu0 0.0
    %88 = vmatprep.subr.mxu0 0.0
    %89 = vmatpush1.msra.mxu0 0.0
    %90 = vmatprep.subr.mxu0 0.0
    %91 = vmatpush1.msra.mxu0 0.0
    %92 = vmatprep.subr.mxu0 0.0
    %93 = vmatpush1.msra.mxu0 0.0
    %94 = vmatprep.subr.mxu0 0.0
    %95 = vmatpush1.msra.mxu0 0.0
    %96 = vmatprep.subr.mxu0 0.0
    %97 = vmatpush1.msra.mxu0 0.0
    %98 = vmatprep.subr.mxu0 0.0
    %99 = vmatpush1.msra.mxu0 0.0
    %100 = vmatprep.subr.mxu0 0.0
    %101 = vmatpush1.msra.mxu0 0.0
    %102 = vmatprep.subr.mxu0 0.0
    %103 = vmatpush1.msra.mxu0 0.0
    %104 = vmatprep.mubr.f32.mxu0 0.0
    %105 = vmatmul.mubr.f32.gmra.mrb[0].mxu0 %v15
    %v106 = vpop.f32.mrb[0].mxu0
    %v107 = vadd.f32 %v38, %v106
    %v108 = vpop.f32.mrb[0].mxu0
    %109 = vmatprep.mubr.f32.mxu0 0.0
    %110 = vmatmul.mubr.f32.gmra.mrb[0].mxu0 %v16
    %v111 = vpop.f32.mrb[0].mxu0
    %v112 = vadd.f32 %v38, %v111
    %v113 = vpop.f32.mrb[0].mxu0
    %114 = vdwg.mxu0
    %115 = vst [vmem:[#allocation2] sm:$0xff] %v107
    %116 = vst [vmem:[#allocation2 + $0x8] sm:$0xff] %v112
    // Predicated region
    $region14: #{decoder_gru_forward.3} parent=1 // pred_check
      _
    $region15: #{decoder_gru_forward.3} parent=1 // pred_check_branch
      %118 = sbr.rel (0) target = $region17
    $region16: #{decoder_gru_forward.3} parent=1 // pred_region
      %s120 = ssub.s32 256, 256
      %121 = vsyncadd [#allocation3], %s120
      %s122 = sshll.u32 [#allocation2], 4
      %s123 = int_to_ptr.vmem [resolvable:$true] %s122
      %128 = dma.vmem_to_hbm [thread:$0]  %s123, 256, %s3, [#allocation3], 128, 128, 8
    $region17: #{decoder_gru_forward.3} parent=1 // pred_fallthru
      _
    // Predicated region
    $region18: #{decoder_gru_forward.3} parent=1 // pred_check
      _
    $region19: #{decoder_gru_forward.3} parent=1 // pred_check_branch
      %130 = sbr.rel (0) target = $region21
    $region20: #{decoder_gru_forward.3} parent=1 // pred_region
      %131 = dma.done [#allocation3], 256
    $region21: #{decoder_gru_forward.3} parent=1 // pred_fallthru
      _
    %132 = vsyncpa [#allocation3], 1

// kernel: decoder_gru_forward.2
$region0: #{decoder_gru_forward.2}
  #allocation0 [shape = 'u32[]', space=smem, size = 0x4, offset = 0x4, fixed_abs, tag = 'smem constant byte address 0x4 - core index']
  #allocation1 [shape = 'u32[144,128]{1,0:T(1,128)}', space=vmem, size = 0x12000, scoped, tag = 'internal scratch']
  #allocation2 [shape = 'f32[8,128]{1,0:T(8,128)}', space=vmem, size = 0x1000, scoped, tag = 'scratch operand']
  #allocation3 [shape = 'f32[8,8,384]{2,1,0:T(8,128)}', space=vmem, size = 0x18000, scoped, tag = 'scratch operand']
  %s0 = inlined_call_operand.vmem [shape: f32[8,8,32], index: 0, kind: input, shape index: {}]
  %s1 = inlined_call_operand.vmem [shape: s32[8,1], index: 1, kind: input, shape index: {}]
  %s2 = inlined_call_operand.vmem [shape: f32[8,128], index: 2, kind: input, shape index: {}]
  %s3 = inlined_call_operand.vmem [shape: f32[32,384], index: 3, kind: input, shape index: {}]
  %s4 = inlined_call_operand.vmem [shape: f32[1,384], index: 4, kind: input, shape index: {}]
  %s5 = inlined_call_operand.vmem [shape: f32[128,384], index: 5, kind: input, shape index: {}]
  %s6 = inlined_call_operand.vmem [shape: f32[1,384], index: 6, kind: input, shape index: {}]
  %s7 = inlined_call_operand.vmem [shape: f32[8,8,128], index: 7, kind: output, shape index: {}]
  %s8 = sld [smem:[#allocation0]]
  $region42: #{decoder_gru_forward.2} parent=0
    _
  %s10 = ssub.s32 1, %s8
  %s11 = scalar_select 0, %s10, %s8
  // Predicated region
  $region2: #{decoder_gru_forward.2} parent=0 // pred_check
    _
  $region3: #{decoder_gru_forward.2} parent=0 // pred_check_branch
    %13 = sbr.rel (0) target = $region5
  $region4: #{decoder_gru_forward.2} parent=0 // pred_region
    _
  $region5: #{decoder_gru_forward.2} parent=0 // pred_fallthru
    _
  // Predicated region
  $region6: #{decoder_gru_forward.2} parent=0 // pred_check
    _
  $region7: #{decoder_gru_forward.2} parent=0 // pred_check_branch
    %15 = sbr.rel (0) target = $region9
  $region8: #{decoder_gru_forward.2} parent=0 // pred_region
    _
  $region9: #{decoder_gru_forward.2} parent=0 // pred_fallthru
    _
  // Predicated region
  $region10: #{decoder_gru_forward.2} parent=0 // pred_check
    _
  $region11: #{decoder_gru_forward.2} parent=0 // pred_check_branch
    %17 = sbr.rel (0) target = $region13
  $region12: #{decoder_gru_forward.2} parent=0 // pred_region
    _
  $region13: #{decoder_gru_forward.2} parent=0 // pred_fallthru
    _
  // Predicated region
  $region14: #{decoder_gru_forward.2} parent=0 // pred_check
    _
  $region15: #{decoder_gru_forward.2} parent=0 // pred_check_branch
    %19 = sbr.rel (0) target = $region17
  $region16: #{decoder_gru_forward.2} parent=0 // pred_region
    _
  $region17: #{decoder_gru_forward.2} parent=0 // pred_fallthru
    _
  // Predicated region
  $region18: #{decoder_gru_forward.2} parent=0 // pred_check
    _
  $region19: #{decoder_gru_forward.2} parent=0 // pred_check_branch
    %21 = sbr.rel (0) target = $region21
  $region20: #{decoder_gru_forward.2} parent=0 // pred_region
    _
  $region21: #{decoder_gru_forward.2} parent=0 // pred_fallthru
    _
  // Predicated region
  $region22: #{decoder_gru_forward.2} parent=0 // pred_check
    _
  $region23: #{decoder_gru_forward.2} parent=0 // pred_check_branch
    %23 = sbr.rel (0) target = $region25
  $region24: #{decoder_gru_forward.2} parent=0 // pred_region
    _
  $region25: #{decoder_gru_forward.2} parent=0 // pred_fallthru
    _
  // Predicated region
  $region26: #{decoder_gru_forward.2} parent=0 // pred_check
    _
  $region27: #{decoder_gru_forward.2} parent=0 // pred_check_branch
    %25 = sbr.rel (0) target = $region29
  $region28: #{decoder_gru_forward.2} parent=0 // pred_region
    _
  $region29: #{decoder_gru_forward.2} parent=0 // pred_fallthru
    _
  %p26 = scmp.eq.s32.totalorder 0, 0
  // Predicated region
  $region30: #{decoder_gru_forward.2} parent=0 // pred_check
    %p27 = pneg %p26
  $region31: #{decoder_gru_forward.2} parent=0 // pred_check_branch
    %29 = sbr.rel (%p27) target = $region33
  $region32: #{decoder_gru_forward.2} parent=0 // pred_region
    %v30 = vld [vmem:[%s2] sm:$0xff]
    %31 = vst [vmem:[#allocation2] sm:$0xff] %v30
  $region33: #{decoder_gru_forward.2} parent=0 // pred_fallthru
    _
  %v32 = vld [vmem:[%s0] sm:$0xff]
  %v33 = vld [vmem:[%s0 + $0x8] sm:$0xff]
  %v34 = vld [vmem:[%s0 + $0x10] sm:$0xff]
  %v35 = vld [vmem:[%s0 + $0x18] sm:$0xff]
  %v36 = vld [vmem:[%s0 + $0x20] sm:$0xff]
  %v37 = vld [vmem:[%s0 + $0x28] sm:$0xff]
  %v38 = vld [vmem:[%s0 + $0x30] sm:$0xff]
  %v39 = vld [vmem:[%s0 + $0x38] sm:$0xff]
  %v40 = vld [vmem:[%s3] sm:$0xff]
  %v41 = vld [vmem:[%s3 + $0x8] sm:$0xff]
  %v42 = vld [vmem:[%s3 + $0x10] sm:$0xff]
  %v43 = vld [vmem:[%s3 + $0x18] sm:$0xff]
  %v44 = vld [vmem:[%s3 + $0x20] sm:$0xff]
  %v45 = vld [vmem:[%s3 + $0x28] sm:$0xff]
  %v46 = vld [vmem:[%s3 + $0x30] sm:$0xff]
  %v47 = vld [vmem:[%s3 + $0x38] sm:$0xff]
  %v48 = vld [vmem:[%s3 + $0x40] sm:$0xff]
  %v49 = vld [vmem:[%s3 + $0x48] sm:$0xff]
  %v50 = vld [vmem:[%s3 + $0x50] sm:$0xff]
  %v51 = vld [vmem:[%s3 + $0x58] sm:$0xff]
  %v52 = vld [vmem:[%s4] sm:$0x7]
  %v54 = vlaneseq
  %v55 = vshrl.u32 %v54, 7
  %v56 = vsub.s32 0, %v55
  %v57 = vrot.slane %v52, %v56
  %v58 = vlaneseq
  %v59 = vshrl.u32 %v58, 7
  %v60 = vsub.s32 1, %v59
  %v61 = vrot.slane %v52, %v60
  %v62 = vlaneseq
  %v63 = vshrl.u32 %v62, 7
  %v64 = vsub.s32 2, %v63
  %v65 = vrot.slane %v52, %v64
  %vm69 = vcmask 261120
  %v71 = vsel %vm69, %v32, 0
  %v74 = vsel %vm69, %v33, 0
  %v77 = vsel %vm69, %v34, 0
  %v80 = vsel %vm69, %v35, 0
  %v83 = vsel %vm69, %v36, 0
  %v86 = vsel %vm69, %v37, 0
  %v89 = vsel %vm69, %v38, 0
  %v92 = vsel %vm69, %v39, 0
  %94 = vmatprep.subr.mxu0 %v41
  %95 = vmatpush1.msra.mxu0 %v40
  %96 = vmatprep.subr.mxu0 %v44
  %97 = vmatpush1.msra.mxu0 %v43
  %98 = vmatprep.subr.mxu0 %v47
  %99 = vmatpush1.msra.mxu0 %v46
  %100 = vmatprep.subr.mxu0 %v50
  %101 = vmatpush1.msra.mxu0 %v49
  %102 = vmatprep.subr.mxu0 0.0
  %103 = vmatpush1.msra.mxu0 0.0
  %104 = vmatprep.subr.mxu0 0.0
  %105 = vmatpush1.msra.mxu0 0.0
  %106 = vmatprep.subr.mxu0 0.0
  %107 = vmatpush1.msra.mxu0 0.0
  %108 = vmatprep.subr.mxu0 0.0
  %109 = vmatpush1.msra.mxu0 0.0
  %110 = vmatprep.subr.mxu0 0.0
  %111 = vmatpush1.msra.mxu0 0.0
  %112 = vmatprep.subr.mxu0 0.0
  %113 = vmatpush1.msra.mxu0 0.0
  %114 = vmatprep.subr.mxu0 0.0
  %115 = vmatpush1.msra.mxu0 0.0
  %116 = vmatprep.subr.mxu0 0.0
  %117 = vmatpush1.msra.mxu0 0.0
  %118 = vmatprep.subr.mxu0 0.0
  %119 = vmatpush1.msra.mxu0 0.0
  %120 = vmatprep.subr.mxu0 0.0
  %121 = vmatpush1.msra.mxu0 0.0
  %122 = vmatprep.subr.mxu0 0.0
  %123 = vmatpush1.msra.mxu0 0.0
  %124 = vmatprep.subr.mxu0 0.0
  %125 = vmatpush1.msra.mxu0 0.0
  %126 = vmatprep.subr.mxu0 0.0
  %127 = vmatpush1.msra.mxu0 0.0
  %128 = vmatprep.subr.mxu0 0.0
  %129 = vmatpush1.msra.mxu0 0.0
  %130 = vmatprep.subr.mxu0 0.0
  %131 = vmatpush1.msra.mxu0 0.0
  %132 = vmatprep.subr.mxu0 0.0
  %133 = vmatpush1.msra.mxu0 0.0
  %134 = vmatprep.subr.mxu0 0.0
  %135 = vmatpush1.msra.mxu0 0.0
  %136 = vmatprep.subr.mxu0 0.0
  %137 = vmatpush1.msra.mxu0 0.0
  %138 = vmatprep.subr.mxu0 0.0
  %139 = vmatpush1.msra.mxu0 0.0
  %140 = vmatprep.subr.mxu0 0.0
  %141 = vmatpush1.msra.mxu0 0.0
  %142 = vmatprep.subr.mxu0 0.0
  %143 = vmatpush1.msra.mxu0 0.0
  %144 = vmatprep.subr.mxu0 0.0
  %145 = vmatpush1.msra.mxu0 0.0
  %146 = vmatprep.subr.mxu0 0.0
  %147 = vmatpush1.msra.mxu0 0.0
  %148 = vmatprep.subr.mxu0 0.0
  %149 = vmatpush1.msra.mxu0 0.0
  %150 = vmatprep.subr.mxu0 0.0
  %151 = vmatpush1.msra.mxu0 0.0
  %152 = vmatprep.subr.mxu0 0.0
  %153 = vmatpush1.msra.mxu0 0.0
  %154 = vmatprep.subr.mxu0 0.0
  %155 = vmatpush1.msra.mxu0 0.0
  %156 = vmatprep.subr.mxu0 0.0
  %157 = vmatpush1.msra.mxu0 0.0
  %158 = vmatprep.mubr.f32.mxu0 0.0
  %159 = vmatmul.mubr.f32.gmra.mrb[0].mxu0 %v71
  %v160 = vpop.f32.mrb[0].mxu0
  %v161 = vadd.f32 %v57, %v160
  %v162 = vpop.f32.mrb[0].mxu0
  %v163 = vadd.f32 %v61, %v162
  %164 = vmatprep.mubr.f32.mxu0 0.0
  %165 = vmatmul.mubr.f32.gmra.mrb[0].mxu0 %v74
  %v166 = vpop.f32.mrb[0].mxu0
  %v167 = vadd.f32 %v57, %v166
  %v168 = vpop.f32.mrb[0].mxu0
  %v169 = vadd.f32 %v61, %v168
  %170 = vmatprep.mubr.f32.mxu0 0.0
  %171 = vmatmul.mubr.f32.gmra.mrb[0].mxu0 %v77
  %v172 = vpop.f32.mrb[0].mxu0
  %v173 = vadd.f32 %v57, %v172
  %v174 = vpop.f32.mrb[0].mxu0
  %v175 = vadd.f32 %v61, %v174
  %176 = vmatprep.mubr.f32.mxu0 0.0
  %177 = vmatmul.mubr.f32.gmra.mrb[0].mxu0 %v80
  %v178 = vpop.f32.mrb[0].mxu0
  %v179 = vadd.f32 %v57, %v178
  %v180 = vpop.f32.mrb[0].mxu0
  %v181 = vadd.f32 %v61, %v180
  %182 = vmatprep.mubr.f32.mxu0 0.0
  %183 = vmatmul.mubr.f32.gmra.mrb[0].mxu0 %v83
  %v184 = vpop.f32.mrb[0].mxu0
  %v185 = vadd.f32 %v57, %v184
  %v186 = vpop.f32.mrb[0].mxu0
  %v187 = vadd.f32 %v61, %v186
  %188 = vmatprep.mubr.f32.mxu0 0.0
  %189 = vmatmul.mubr.f32.gmra.mrb[0].mxu0 %v86
  %v190 = vpop.f32.mrb[0].mxu0
  %v191 = vadd.f32 %v57, %v190
  %v192 = vpop.f32.mrb[0].mxu0
  %v193 = vadd.f32 %v61, %v192
  %194 = vmatprep.mubr.f32.mxu0 0.0
  %195 = vmatmul.mubr.f32.gmra.mrb[0].mxu0 %v89
  %v196 = vpop.f32.mrb[0].mxu0
  %v197 = vadd.f32 %v57, %v196
  %v198 = vpop.f32.mrb[0].mxu0
  %v199 = vadd.f32 %v61, %v198
  %200 = vmatprep.mubr.f32.mxu0 0.0
  %201 = vmatmul.mubr.f32.gmra.mrb[0].mxu0 %v92
  %v202 = vpop.f32.mrb[0].mxu0
  %v203 = vadd.f32 %v57, %v202
  %v204 = vpop.f32.mrb[0].mxu0
  %v205 = vadd.f32 %v61, %v204
  %206 = vdwg.mxu0
  %207 = vmatprep.subr.mxu0 0.0
  %208 = vmatpush1.msra.mxu0 %v42
  %209 = vmatprep.subr.mxu0 0.0
  %210 = vmatpush1.msra.mxu0 %v45
  %211 = vmatprep.subr.mxu0 0.0
  %212 = vmatpush1.msra.mxu0 %v48
  %213 = vmatprep.subr.mxu0 0.0
  %214 = vmatpush1.msra.mxu0 %v51
  %215 = vmatprep.subr.mxu0 0.0
  %216 = vmatpush1.msra.mxu0 0.0
  %217 = vmatprep.subr.mxu0 0.0
  %218 = vmatpush1.msra.mxu0 0.0
  %219 = vmatprep.subr.mxu0 0.0
  %220 = vmatpush1.msra.mxu0 0.0
  %221 = vmatprep.subr.mxu0 0.0
  %222 = vmatpush1.msra.mxu0 0.0
  %223 = vmatprep.subr.mxu0 0.0
  %224 = vmatpush1.msra.mxu0 0.0
  %225 = vmatprep.subr.mxu0 0.0
  %226 = vmatpush1.msra.mxu0 0.0
  %227 = vmatprep.subr.mxu0 0.0
  %228 = vmatpush1.msra.mxu0 0.0
  %229 = vmatprep.subr.mxu0 0.0
  %230 = vmatpush1.msra.mxu0 0.0
  %231 = vmatprep.subr.mxu0 0.0
  %232 = vmatpush1.msra.mxu0 0.0
  %233 = vmatprep.subr.mxu0 0.0
  %234 = vmatpush1.msra.mxu0 0.0
  %235 = vmatprep.subr.mxu0 0.0
  %236 = vmatpush1.msra.mxu0 0.0
  %237 = vmatprep.subr.mxu0 0.0
  %238 = vmatpush1.msra.mxu0 0.0
  %239 = vmatprep.subr.mxu0 0.0
  %240 = vmatpush1.msra.mxu0 0.0
  %241 = vmatprep.subr.mxu0 0.0
  %242 = vmatpush1.msra.mxu0 0.0
  %243 = vmatprep.subr.mxu0 0.0
  %244 = vmatpush1.msra.mxu0 0.0
  %245 = vmatprep.subr.mxu0 0.0
  %246 = vmatpush1.msra.mxu0 0.0
  %247 = vmatprep.subr.mxu0 0.0
  %248 = vmatpush1.msra.mxu0 0.0
  %249 = vmatprep.subr.mxu0 0.0
  %250 = vmatpush1.msra.mxu0 0.0
  %251 = vmatprep.subr.mxu0 0.0
  %252 = vmatpush1.msra.mxu0 0.0
  %253 = vmatprep.subr.mxu0 0.0
  %254 = vmatpush1.msra.mxu0 0.0
  %255 = vmatprep.subr.mxu0 0.0
  %256 = vmatpush1.msra.mxu0 0.0
  %257 = vmatprep.subr.mxu0 0.0
  %258 = vmatpush1.msra.mxu0 0.0
  %259 = vmatprep.subr.mxu0 0.0
  %260 = vmatpush1.msra.mxu0 0.0
  %261 = vmatprep.subr.mxu0 0.0
  %262 = vmatpush1.msra.mxu0 0.0
  %263 = vmatprep.subr.mxu0 0.0
  %264 = vmatpush1.msra.mxu0 0.0
  %265 = vmatprep.subr.mxu0 0.0
  %266 = vmatpush1.msra.mxu0 0.0
  %267 = vmatprep.subr.mxu0 0.0
  %268 = vmatpush1.msra.mxu0 0.0
  %269 = vmatprep.subr.mxu0 0.0
  %270 = vmatpush1.msra.mxu0 0.0
  %271 = vmatprep.mubr.f32.mxu0 0.0
  %272 = vmatmul.mubr.f32.gmra.mrb[0].mxu0 %v71
  %v273 = vpop.f32.mrb[0].mxu0
  %v274 = vadd.f32 %v65, %v273
  %v275 = vpop.f32.mrb[0].mxu0
  %276 = vmatprep.mubr.f32.mxu0 0.0
  %277 = vmatmul.mubr.f32.gmra.mrb[0].mxu0 %v74
  %v278 = vpop.f32.mrb[0].mxu0
  %v279 = vadd.f32 %v65, %v278
  %v280 = vpop.f32.mrb[0].mxu0
  %281 = vmatprep.mubr.f32.mxu0 0.0
  %282 = vmatmul.mubr.f32.gmra.mrb[0].mxu0 %v77
  %v283 = vpop.f32.mrb[0].mxu0
  %v284 = vadd.f32 %v65, %v283
  %v285 = vpop.f32.mrb[0].mxu0
  %286 = vmatprep.mubr.f32.mxu0 0.0
  %287 = vmatmul.mubr.f32.gmra.mrb[0].mxu0 %v80
  %v288 = vpop.f32.mrb[0].mxu0
  %v289 = vadd.f32 %v65, %v288
  %v290 = vpop.f32.mrb[0].mxu0
  %291 = vmatprep.mubr.f32.mxu0 0.0
  %292 = vmatmul.mubr.f32.gmra.mrb[0].mxu0 %v83
  %v293 = vpop.f32.mrb[0].mxu0
  %v294 = vadd.f32 %v65, %v293
  %v295 = vpop.f32.mrb[0].mxu0
  %296 = vmatprep.mubr.f32.mxu0 0.0
  %297 = vmatmul.mubr.f32.gmra.mrb[0].mxu0 %v86
  %v298 = vpop.f32.mrb[0].mxu0
  %v299 = vadd.f32 %v65, %v298
  %v300 = vpop.f32.mrb[0].mxu0
  %301 = vmatprep.mubr.f32.mxu0 0.0
  %302 = vmatmul.mubr.f32.gmra.mrb[0].mxu0 %v89
  %v303 = vpop.f32.mrb[0].mxu0
  %v304 = vadd.f32 %v65, %v303
  %v305 = vpop.f32.mrb[0].mxu0
  %306 = vmatprep.mubr.f32.mxu0 0.0
  %307 = vmatmul.mubr.f32.gmra.mrb[0].mxu0 %v92
  %v308 = vpop.f32.mrb[0].mxu0
  %v309 = vadd.f32 %v65, %v308
  %v310 = vpop.f32.mrb[0].mxu0
  %311 = vdwg.mxu0
  %312 = vst [vmem:[#allocation3] sm:$0xff] %v161
  %313 = vst [vmem:[#allocation3 + $0x8] sm:$0xff] %v163
  %314 = vst [vmem:[#allocation3 + $0x10] sm:$0xff] %v274
  %315 = vst [vmem:[#allocation3 + $0x18] sm:$0xff] %v167
  %316 = vst [vmem:[#allocation3 + $0x20] sm:$0xff] %v169
  %317 = vst [vmem:[#allocation3 + $0x28] sm:$0xff] %v279
  %318 = vst [vmem:[#allocation3 + $0x30] sm:$0xff] %v173
  %319 = vst [vmem:[#allocation3 + $0x38] sm:$0xff] %v175
  %320 = vst [vmem:[#allocation3 + $0x40] sm:$0xff] %v284
  %321 = vst [vmem:[#allocation3 + $0x48] sm:$0xff] %v179
  %322 = vst [vmem:[#allocation3 + $0x50] sm:$0xff] %v181
  %323 = vst [vmem:[#allocation3 + $0x58] sm:$0xff] %v289
  %324 = vst [vmem:[#allocation3 + $0x60] sm:$0xff] %v185
  %325 = vst [vmem:[#allocation3 + $0x68] sm:$0xff] %v187
  %326 = vst [vmem:[#allocation3 + $0x70] sm:$0xff] %v294
  %327 = vst [vmem:[#allocation3 + $0x78] sm:$0xff] %v191
  %328 = vst [vmem:[#allocation3 + $0x80] sm:$0xff] %v193
  %329 = vst [vmem:[#allocation3 + $0x88] sm:$0xff] %v299
  %330 = vst [vmem:[#allocation3 + $0x90] sm:$0xff] %v197
  %331 = vst [vmem:[#allocation3 + $0x98] sm:$0xff] %v199
  %332 = vst [vmem:[#allocation3 + $0xa0] sm:$0xff] %v304
  %333 = vst [vmem:[#allocation3 + $0xa8] sm:$0xff] %v203
  %334 = vst [vmem:[#allocation3 + $0xb0] sm:$0xff] %v205
  %335 = vst [vmem:[#allocation3 + $0xb8] sm:$0xff] %v309
  %v336 = vld [vmem:[%s5] sm:$0xff]
  %v337 = vld [vmem:[%s5 + $0x8] sm:$0xff]
  %v338 = vld [vmem:[%s5 + $0x10] sm:$0xff]
  %v339 = vld [vmem:[%s5 + $0x18] sm:$0xff]
  %v340 = vld [vmem:[%s5 + $0x20] sm:$0xff]
  %v341 = vld [vmem:[%s5 + $0x28] sm:$0xff]
  %v342 = vld [vmem:[%s5 + $0x30] sm:$0xff]
  %v343 = vld [vmem:[%s5 + $0x38] sm:$0xff]
  %v344 = vld [vmem:[%s5 + $0x40] sm:$0xff]
  %v345 = vld [vmem:[%s5 + $0x48] sm:$0xff]
  %v346 = vld [vmem:[%s5 + $0x50] sm:$0xff]
  %v347 = vld [vmem:[%s5 + $0x58] sm:$0xff]
  %v348 = vld [vmem:[%s5 + $0x60] sm:$0xff]
  %v349 = vld [vmem:[%s5 + $0x68] sm:$0xff]
  %v350 = vld [vmem:[%s5 + $0x70] sm:$0xff]
  %v351 = vld [vmem:[%s5 + $0x78] sm:$0xff]
  %v352 = vld [vmem:[%s5 + $0x80] sm:$0xff]
  %v353 = vld [vmem:[%s5 + $0x88] sm:$0xff]
  %v354 = vld [vmem:[%s5 + $0x90] sm:$0xff]
  %v355 = vld [vmem:[%s5 + $0x98] sm:$0xff]
  %v356 = vld [vmem:[%s5 + $0xa0] sm:$0xff]
  %v357 = vld [vmem:[%s5 + $0xa8] sm:$0xff]
  %v358 = vld [vmem:[%s5 + $0xb0] sm:$0xff]
  %v359 = vld [vmem:[%s5 + $0xb8] sm:$0xff]
  %v360 = vld [vmem:[%s5 + $0xc0] sm:$0xff]
  %v361 = vld [vmem:[%s5 + $0xc8] sm:$0xff]
  %v362 = vld [vmem:[%s5 + $0xd0] sm:$0xff]
  %v363 = vld [vmem:[%s5 + $0xd8] sm:$0xff]
  %v364 = vld [vmem:[%s5 + $0xe0] sm:$0xff]
  %v365 = vld [vmem:[%s5 + $0xe8] sm:$0xff]
  %v366 = vld [vmem:[%s5 + $0xf0] sm:$0xff]
  %v367 = vld [vmem:[%s5 + $0xf8] sm:$0xff]
  %v368 = vld [vmem:[%s5 + $0x100] sm:$0xff]
  %v369 = vld [vmem:[%s5 + $0x108] sm:$0xff]
  %v370 = vld [vmem:[%s5 + $0x110] sm:$0xff]
  %v371 = vld [vmem:[%s5 + $0x118] sm:$0xff]
  %v372 = vld [vmem:[%s5 + $0x120] sm:$0xff]
  %v373 = vld [vmem:[%s5 + $0x128] sm:$0xff]
  %v374 = vld [vmem:[%s5 + $0x130] sm:$0xff]
  %v375 = vld [vmem:[%s5 + $0x138] sm:$0xff]
  %v376 = vld [vmem:[%s5 + $0x140] sm:$0xff]
  %v377 = vld [vmem:[%s5 + $0x148] sm:$0xff]
  %v378 = vld [vmem:[%s5 + $0x150] sm:$0xff]
  %v379 = vld [vmem:[%s5 + $0x158] sm:$0xff]
  %v380 = vld [vmem:[%s5 + $0x160] sm:$0xff]
  %v381 = vld [vmem:[%s5 + $0x168] sm:$0xff]
  %v382 = vld [vmem:[%s5 + $0x170] sm:$0xff]
  %v383 = vld [vmem:[%s5 + $0x178] sm:$0xff]
  %v384 = vld [vmem:[%s6] sm:$0x7]
  %v385 = vld [vmem:[%s1] sm:$0xff]
  %v386 = vld [vmem:[#allocation2] sm:$0xff]
  %s387 = smul.u32 0, 8
  %v388 = vld [vmem:[#allocation3] sm:$0xff]
  %v389 = vld [vmem:[#allocation3 + $0x8] sm:$0xff]
  %v390 = vld [vmem:[#allocation3 + $0x10] sm:$0xff]
  %v392 = vlaneseq
  %v393 = vshrl.u32 %v392, 7
  %v394 = vsub.s32 0, %v393
  %v395 = vrot.slane %v384, %v394
  %v396 = vlaneseq
  %v397 = vshrl.u32 %v396, 7
  %v398 = vsub.s32 1, %v397
  %v399 = vrot.slane %v384, %v398
  %v400 = vlaneseq
  %v401 = vshrl.u32 %v400, 7
  %v402 = vsub.s32 2, %v401
  %v403 = vrot.slane %v384, %v402
  %407 = vmatprep.subr.mxu0 %v337
  %408 = vmatpush1.msra.mxu0 %v336
  %409 = vmatprep.subr.mxu0 %v340
  %410 = vmatpush1.msra.mxu0 %v339
  %411 = vmatprep.subr.mxu0 %v343
  %412 = vmatpush1.msra.mxu0 %v342
  %413 = vmatprep.subr.mxu0 %v346
  %414 = vmatpush1.msra.mxu0 %v345
  %415 = vmatprep.subr.mxu0 %v349
  %416 = vmatpush1.msra.mxu0 %v348
  %417 = vmatprep.subr.mxu0 %v352
  %418 = vmatpush1.msra.mxu0 %v351
  %419 = vmatprep.subr.mxu0 %v355
  %420 = vmatpush1.msra.mxu0 %v354
  %421 = vmatprep.subr.mxu0 %v358
  %422 = vmatpush1.msra.mxu0 %v357
  %423 = vmatprep.subr.mxu0 %v361
  %424 = vmatpush1.msra.mxu0 %v360
  %425 = vmatprep.subr.mxu0 %v364
  %426 = vmatpush1.msra.mxu0 %v363
  %427 = vmatprep.subr.mxu0 %v367
  %428 = vmatpush1.msra.mxu0 %v366
  %429 = vmatprep.subr.mxu0 %v370
  %430 = vmatpush1.msra.mxu0 %v369
  %431 = vmatprep.subr.mxu0 %v373
  %432 = vmatpush1.msra.mxu0 %v372
  %433 = vmatprep.subr.mxu0 %v376
  %434 = vmatpush1.msra.mxu0 %v375
  %435 = vmatprep.subr.mxu0 %v379
  %436 = vmatpush1.msra.mxu0 %v378
  %437 = vmatprep.subr.mxu0 %v382
  %438 = vmatpush1.msra.mxu0 %v381
  %439 = vmatprep.subr.mxu0 0.0
  %440 = vmatpush1.msra.mxu0 0.0
  %441 = vmatprep.subr.mxu0 0.0
  %442 = vmatpush1.msra.mxu0 0.0
  %443 = vmatprep.subr.mxu0 0.0
  %444 = vmatpush1.msra.mxu0 0.0
  %445 = vmatprep.subr.mxu0 0.0
  %446 = vmatpush1.msra.mxu0 0.0
  %447 = vmatprep.subr.mxu0 0.0
  %448 = vmatpush1.msra.mxu0 0.0
  %449 = vmatprep.subr.mxu0 0.0
  %450 = vmatpush1.msra.mxu0 0.0
  %451 = vmatprep.subr.mxu0 0.0
  %452 = vmatpush1.msra.mxu0 0.0
  %453 = vmatprep.subr.mxu0 0.0
  %454 = vmatpush1.msra.mxu0 0.0
  %455 = vmatprep.subr.mxu0 0.0
  %456 = vmatpush1.msra.mxu0 0.0
  %457 = vmatprep.subr.mxu0 0.0
  %458 = vmatpush1.msra.mxu0 0.0
  %459 = vmatprep.subr.mxu0 0.0
  %460 = vmatpush1.msra.mxu0 0.0
  %461 = vmatprep.subr.mxu0 0.0
  %462 = vmatpush1.msra.mxu0 0.0
  %463 = vmatprep.subr.mxu0 0.0
  %464 = vmatpush1.msra.mxu0 0.0
  %465 = vmatprep.subr.mxu0 0.0
  %466 = vmatpush1.msra.mxu0 0.0
  %467 = vmatprep.subr.mxu0 0.0
  %468 = vmatpush1.msra.mxu0 0.0
  %469 = vmatprep.subr.mxu0 0.0
  %470 = vmatpush1.msra.mxu0 0.0
  %471 = vmatprep.mubr.f32.mxu0 0.0
  %472 = vmatmul.mubr.f32.gmra.mrb[0].mxu0 %v386
  %v473 = vpop.f32.mrb[0].mxu0
  %v474 = vadd.f32 %v395, %v473
  %v475 = vpop.f32.mrb[0].mxu0
  %v476 = vadd.f32 %v399, %v475
  %477 = vdwg.mxu0
  %478 = vmatprep.subr.mxu0 0.0
  %479 = vmatpush1.msra.mxu0 %v338
  %480 = vmatprep.subr.mxu0 0.0
  %481 = vmatpush1.msra.mxu0 %v341
  %482 = vmatprep.subr.mxu0 0.0
  %483 = vmatpush1.msra.mxu0 %v344
  %484 = vmatprep.subr.mxu0 0.0
  %485 = vmatpush1.msra.mxu0 %v347
  %486 = vmatprep.subr.mxu0 0.0
  %487 = vmatpush1.msra.mxu0 %v350
  %488 = vmatprep.subr.mxu0 0.0
  %489 = vmatpush1.msra.mxu0 %v353
  %490 = vmatprep.subr.mxu0 0.0
  %491 = vmatpush1.msra.mxu0 %v356
  %492 = vmatprep.subr.mxu0 0.0
  %493 = vmatpush1.msra.mxu0 %v359
  %494 = vmatprep.subr.mxu0 0.0
  %495 = vmatpush1.msra.mxu0 %v362
  %496 = vmatprep.subr.mxu0 0.0
  %497 = vmatpush1.msra.mxu0 %v365
  %498 = vmatprep.subr.mxu0 0.0
  %499 = vmatpush1.msra.mxu0 %v368
  %500 = vmatprep.subr.mxu0 0.0
  %501 = vmatpush1.msra.mxu0 %v371
  %502 = vmatprep.subr.mxu0 0.0
  %503 = vmatpush1.msra.mxu0 %v374
  %504 = vmatprep.subr.mxu0 0.0
  %505 = vmatpush1.msra.mxu0 %v377
  %506 = vmatprep.subr.mxu0 0.0
  %507 = vmatpush1.msra.mxu0 %v380
  %508 = vmatprep.subr.mxu0 0.0
  %509 = vmatpush1.msra.mxu0 %v383
  %510 = vmatprep.subr.mxu0 0.0
  %511 = vmatpush1.msra.mxu0 0.0
  %512 = vmatprep.subr.mxu0 0.0
  %513 = vmatpush1.msra.mxu0 0.0
  %514 = vmatprep.subr.mxu0 0.0
  %515 = vmatpush1.msra.mxu0 0.0
  %516 = vmatprep.subr.mxu0 0.0
  %517 = vmatpush1.msra.mxu0 0.0
  %518 = vmatprep.subr.mxu0 0.0
  %519 = vmatpush1.msra.mxu0 0.0
  %520 = vmatprep.subr.mxu0 0.0
  %521 = vmatpush1.msra.mxu0 0.0
  %522 = vmatprep.subr.mxu0 0.0
  %523 = vmatpush1.msra.mxu0 0.0
  %524 = vmatprep.subr.mxu0 0.0
  %525 = vmatpush1.msra.mxu0 0.0
  %526 = vmatprep.subr.mxu0 0.0
  %527 = vmatpush1.msra.mxu0 0.0
  %528 = vmatprep.subr.mxu0 0.0
  %529 = vmatpush1.msra.mxu0 0.0
  %530 = vmatprep.subr.mxu0 0.0
  %531 = vmatpush1.msra.mxu0 0.0
  %532 = vmatprep.subr.mxu0 0.0
  %533 = vmatpush1.msra.mxu0 0.0
  %534 = vmatprep.subr.mxu0 0.0
  %535 = vmatpush1.msra.mxu0 0.0
  %536 = vmatprep.subr.mxu0 0.0
  %537 = vmatpush1.msra.mxu0 0.0
  %538 = vmatprep.subr.mxu0 0.0
  %539 = vmatpush1.msra.mxu0 0.0
  %540 = vmatprep.subr.mxu0 0.0
  %541 = vmatpush1.msra.mxu0 0.0
  %542 = vmatprep.mubr.f32.mxu0 0.0
  %543 = vmatmul.mubr.f32.gmra.mrb[0].mxu0 %v386
  %v544 = vpop.f32.mrb[0].mxu0
  %v545 = vadd.f32 %v403, %v544
  %v546 = vpop.f32.mrb[0].mxu0
  %547 = vdwg.mxu0
  %v548 = vadd.f32 %v388, %v474
  %v549 = vxor.u32 %v548, 2147483648
  %v550 = vmul.f32 %v549, 1.442695
  %v551 = vpow.pop %v550
  %v552 = vadd.f32 %v551, 1.0
  %v553 = vrcp.pop %v552
  %v554 = vmul.f32 1.0, %v553
  %v555 = vadd.f32 %v389, %v476
  %v556 = vxor.u32 %v555, 2147483648
  %v557 = vmul.f32 %v556, 1.442695
  %v558 = vpow.pop %v557
  %v559 = vadd.f32 %v558, 1.0
  %v560 = vrcp.pop %v559
  %v561 = vmul.f32 1.0, %v560
  %v562 = vmul.f32 %v554, %v545
  %v563 = vadd.f32 %v390, %v562
  %v564 = vtanh.pop %v563
  %v565 = vsub.f32 %v386, %v564
  %v566 = vmul.f32 %v561, %v565
  %v567 = vadd.f32 %v564, %v566
  %v568 = vstv %s387
  %vm569 = vcmp.lt.s32.totalorder %v568, %v385
  %v570 = vsel %vm569, 1, 0
  %571 = vset.pattern.permute.xlu0 0
  %572 = vperm.xlu0 %571, %v570
  %v573 = vpop.permute.xlu0 %572
  %vm574 = vcmp.eq.s32.totalorder %v573, 1
  %v575 = vsel %vm574, %v567, %v386
  %v576 = vsel %vm574, %v567, 0.0
  %577 = vst [vmem:[%s7] sm:$0xff] %v576
  %s578 = sadd.s32 %s387, 1
  %s579 = scalar_lea.vmem [#allocation3], 24
  %v580 = vld [vmem:[%s579] sm:$0xff]
  %v581 = vld [vmem:[%s579 + $0x8] sm:$0xff]
  %v582 = vld [vmem:[%s579 + $0x10] sm:$0xff]
  %583 = vmatprep.subr.mxu0 %v337
  %584 = vmatpush1.msra.mxu0 %v336
  %585 = vmatprep.subr.mxu0 %v340
  %586 = vmatpush1.msra.mxu0 %v339
  %587 = vmatprep.subr.mxu0 %v343
  %588 = vmatpush1.msra.mxu0 %v342
  %589 = vmatprep.subr.mxu0 %v346
  %590 = vmatpush1.msra.mxu0 %v345
  %591 = vmatprep.subr.mxu0 %v349
  %592 = vmatpush1.msra.mxu0 %v348
  %593 = vmatprep.subr.mxu0 %v352
  %594 = vmatpush1.msra.mxu0 %v351
  %595 = vmatprep.subr.mxu0 %v355
  %596 = vmatpush1.msra.mxu0 %v354
  %597 = vmatprep.subr.mxu0 %v358
  %598 = vmatpush1.msra.mxu0 %v357
  %599 = vmatprep.subr.mxu0 %v361
  %600 = vmatpush1.msra.mxu0 %v360
  %601 = vmatprep.subr.mxu0 %v364
  %602 = vmatpush1.msra.mxu0 %v363
  %603 = vmatprep.subr.mxu0 %v367
  %604 = vmatpush1.msra.mxu0 %v366
  %605 = vmatprep.subr.mxu0 %v370
  %606 = vmatpush1.msra.mxu0 %v369
  %607 = vmatprep.subr.mxu0 %v373
  %608 = vmatpush1.msra.mxu0 %v372
  %609 = vmatprep.subr.mxu0 %v376
  %610 = vmatpush1.msra.mxu0 %v375
  %611 = vmatprep.subr.mxu0 %v379
  %612 = vmatpush1.msra.mxu0 %v378
  %613 = vmatprep.subr.mxu0 %v382
  %614 = vmatpush1.msra.mxu0 %v381
  %615 = vmatprep.subr.mxu0 0.0
  %616 = vmatpush1.msra.mxu0 0.0
  %617 = vmatprep.subr.mxu0 0.0
  %618 = vmatpush1.msra.mxu0 0.0
  %619 = vmatprep.subr.mxu0 0.0
  %620 = vmatpush1.msra.mxu0 0.0
  %621 = vmatprep.subr.mxu0 0.0
  %622 = vmatpush1.msra.mxu0 0.0
  %623 = vmatprep.subr.mxu0 0.0
  %624 = vmatpush1.msra.mxu0 0.0
  %625 = vmatprep.subr.mxu0 0.0
  %626 = vmatpush1.msra.mxu0 0.0
  %627 = vmatprep.subr.mxu0 0.0
  %628 = vmatpush1.msra.mxu0 0.0
  %629 = vmatprep.subr.mxu0 0.0
  %630 = vmatpush1.msra.mxu0 0.0
  %631 = vmatprep.subr.mxu0 0.0
  %632 = vmatpush1.msra.mxu0 0.0
  %633 = vmatprep.subr.mxu0 0.0
  %634 = vmatpush1.msra.mxu0 0.0
  %635 = vmatprep.subr.mxu0 0.0
  %636 = vmatpush1.msra.mxu0 0.0
  %637 = vmatprep.subr.mxu0 0.0
  %638 = vmatpush1.msra.mxu0 0.0
  %639 = vmatprep.subr.mxu0 0.0
  %640 = vmatpush1.msra.mxu0 0.0
  %641 = vmatprep.subr.mxu0 0.0
  %642 = vmatpush1.msra.mxu0 0.0
  %643 = vmatprep.subr.mxu0 0.0
  %644 = vmatpush1.msra.mxu0 0.0
  %645 = vmatprep.subr.mxu0 0.0
  %646 = vmatpush1.msra.mxu0 0.0
  %647 = vmatprep.mubr.f32.mxu0 0.0
  %648 = vmatmul.mubr.f32.gmra.mrb[0].mxu0 %v575
  %v649 = vpop.f32.mrb[0].mxu0
  %v650 = vadd.f32 %v395, %v649
  %v651 = vpop.f32.mrb[0].mxu0
  %v652 = vadd.f32 %v399, %v651
  %653 = vdwg.mxu0
  %654 = vmatprep.subr.mxu0 0.0
  %655 = vmatpush1.msra.mxu0 %v338
  %656 = vmatprep.subr.mxu0 0.0
  %657 = vmatpush1.msra.mxu0 %v341
  %658 = vmatprep.subr.mxu0 0.0
  %659 = vmatpush1.msra.mxu0 %v344
  %660 = vmatprep.subr.mxu0 0.0
  %661 = vmatpush1.msra.mxu0 %v347
  %662 = vmatprep.subr.mxu0 0.0
  %663 = vmatpush1.msra.mxu0 %v350
  %664 = vmatprep.subr.mxu0 0.0
  %665 = vmatpush1.msra.mxu0 %v353
  %666 = vmatprep.subr.mxu0 0.0
  %667 = vmatpush1.msra.mxu0 %v356
  %668 = vmatprep.subr.mxu0 0.0
  %669 = vmatpush1.msra.mxu0 %v359
  %670 = vmatprep.subr.mxu0 0.0
  %671 = vmatpush1.msra.mxu0 %v362
  %672 = vmatprep.subr.mxu0 0.0
  %673 = vmatpush1.msra.mxu0 %v365
  %674 = vmatprep.subr.mxu0 0.0
  %675 = vmatpush1.msra.mxu0 %v368
  %676 = vmatprep.subr.mxu0 0.0
  %677 = vmatpush1.msra.mxu0 %v371
  %678 = vmatprep.subr.mxu0 0.0
  %679 = vmatpush1.msra.mxu0 %v374
  %680 = vmatprep.subr.mxu0 0.0
  %681 = vmatpush1.msra.mxu0 %v377
  %682 = vmatprep.subr.mxu0 0.0
  %683 = vmatpush1.msra.mxu0 %v380
  %684 = vmatprep.subr.mxu0 0.0
  %685 = vmatpush1.msra.mxu0 %v383
  %686 = vmatprep.subr.mxu0 0.0
  %687 = vmatpush1.msra.mxu0 0.0
  %688 = vmatprep.subr.mxu0 0.0
  %689 = vmatpush1.msra.mxu0 0.0
  %690 = vmatprep.subr.mxu0 0.0
  %691 = vmatpush1.msra.mxu0 0.0
  %692 = vmatprep.subr.mxu0 0.0
  %693 = vmatpush1.msra.mxu0 0.0
  %694 = vmatprep.subr.mxu0 0.0
  %695 = vmatpush1.msra.mxu0 0.0
  %696 = vmatprep.subr.mxu0 0.0
  %697 = vmatpush1.msra.mxu0 0.0
  %698 = vmatprep.subr.mxu0 0.0
  %699 = vmatpush1.msra.mxu0 0.0
  %700 = vmatprep.subr.mxu0 0.0
  %701 = vmatpush1.msra.mxu0 0.0
  %702 = vmatprep.subr.mxu0 0.0
  %703 = vmatpush1.msra.mxu0 0.0
  %704 = vmatprep.subr.mxu0 0.0
  %705 = vmatpush1.msra.mxu0 0.0
  %706 = vmatprep.subr.mxu0 0.0
  %707 = vmatpush1.msra.mxu0 0.0
  %708 = vmatprep.subr.mxu0 0.0
  %709 = vmatpush1.msra.mxu0 0.0
  %710 = vmatprep.subr.mxu0 0.0
  %711 = vmatpush1.msra.mxu0 0.0
  %712 = vmatprep.subr.mxu0 0.0
  %713 = vmatpush1.msra.mxu0 0.0
  %714 = vmatprep.subr.mxu0 0.0
  %715 = vmatpush1.msra.mxu0 0.0
  %716 = vmatprep.subr.mxu0 0.0
  %717 = vmatpush1.msra.mxu0 0.0
  %718 = vmatprep.mubr.f32.mxu0 0.0
  %719 = vmatmul.mubr.f32.gmra.mrb[0].mxu0 %v575
  %v720 = vpop.f32.mrb[0].mxu0
  %v721 = vadd.f32 %v403, %v720
  %v722 = vpop.f32.mrb[0].mxu0
  %723 = vdwg.mxu0
  %v724 = vadd.f32 %v580, %v650
  %v725 = vxor.u32 %v724, 2147483648
  %v726 = vmul.f32 %v725, 1.442695
  %v727 = vpow.pop %v726
  %v728 = vadd.f32 %v727, 1.0
  %v729 = vrcp.pop %v728
  %v730 = vmul.f32 1.0, %v729
  %v731 = vadd.f32 %v581, %v652
  %v732 = vxor.u32 %v731, 2147483648
  %v733 = vmul.f32 %v732, 1.442695
  %v734 = vpow.pop %v733
  %v735 = vadd.f32 %v734, 1.0
  %v736 = vrcp.pop %v735
  %v737 = vmul.f32 1.0, %v736
  %v738 = vmul.f32 %v730, %v721
  %v739 = vadd.f32 %v582, %v738
  %v740 = vtanh.pop %v739
  %v741 = vsub.f32 %v575, %v740
  %v742 = vmul.f32 %v737, %v741
  %v743 = vadd.f32 %v740, %v742
  %v744 = vstv %s578
  %vm745 = vcmp.lt.s32.totalorder %v744, %v385
  %v746 = vsel %vm745, 1, 0
  %747 = vset.pattern.permute.xlu0 0
  %748 = vperm.xlu0 %747, %v746
  %v749 = vpop.permute.xlu0 %748
  %vm750 = vcmp.eq.s32.totalorder %v749, 1
  %v751 = vsel %vm750, %v743, %v575
  %v752 = vsel %vm750, %v743, 0.0
  %s753 = scalar_lea.vmem %s7, 8
  %754 = vst [vmem:[%s753] sm:$0xff] %v752
  %s755 = sadd.s32 %s387, 2
  %s756 = scalar_lea.vmem [#allocation3], 48
  %v757 = vld [vmem:[%s756] sm:$0xff]
  %v758 = vld [vmem:[%s756 + $0x8] sm:$0xff]
  %v759 = vld [vmem:[%s756 + $0x10] sm:$0xff]
  %760 = vmatprep.subr.mxu0 %v337
  %761 = vmatpush1.msra.mxu0 %v336
  %762 = vmatprep.subr.mxu0 %v340
  %763 = vmatpush1.msra.mxu0 %v339
  %764 = vmatprep.subr.mxu0 %v343
  %765 = vmatpush1.msra.mxu0 %v342
  %766 = vmatprep.subr.mxu0 %v346
  %767 = vmatpush1.msra.mxu0 %v345
  %768 = vmatprep.subr.mxu0 %v349
  %769 = vmatpush1.msra.mxu0 %v348
  %770 = vmatprep.subr.mxu0 %v352
  %771 = vmatpush1.msra.mxu0 %v351
  %772 = vmatprep.subr.mxu0 %v355
  %773 = vmatpush1.msra.mxu0 %v354
  %774 = vmatprep.subr.mxu0 %v358
  %775 = vmatpush1.msra.mxu0 %v357
  %776 = vmatprep.subr.mxu0 %v361
  %777 = vmatpush1.msra.mxu0 %v360
  %778 = vmatprep.subr.mxu0 %v364
  %779 = vmatpush1.msra.mxu0 %v363
  %780 = vmatprep.subr.mxu0 %v367
  %781 = vmatpush1.msra.mxu0 %v366
  %782 = vmatprep.subr.mxu0 %v370
  %783 = vmatpush1.msra.mxu0 %v369
  %784 = vmatprep.subr.mxu0 %v373
  %785 = vmatpush1.msra.mxu0 %v372
  %786 = vmatprep.subr.mxu0 %v376
  %787 = vmatpush1.msra.mxu0 %v375
  %788 = vmatprep.subr.mxu0 %v379
  %789 = vmatpush1.msra.mxu0 %v378
  %790 = vmatprep.subr.mxu0 %v382
  %791 = vmatpush1.msra.mxu0 %v381
  %792 = vmatprep.subr.mxu0 0.0
  %793 = vmatpush1.msra.mxu0 0.0
  %794 = vmatprep.subr.mxu0 0.0
  %795 = vmatpush1.msra.mxu0 0.0
  %796 = vmatprep.subr.mxu0 0.0
  %797 = vmatpush1.msra.mxu0 0.0
  %798 = vmatprep.subr.mxu0 0.0
  %799 = vmatpush1.msra.mxu0 0.0
  %800 = vmatprep.subr.mxu0 0.0
  %801 = vmatpush1.msra.mxu0 0.0
  %802 = vmatprep.subr.mxu0 0.0
  %803 = vmatpush1.msra.mxu0 0.0
  %804 = vmatprep.subr.mxu0 0.0
  %805 = vmatpush1.msra.mxu0 0.0
  %806 = vmatprep.subr.mxu0 0.0
  %807 = vmatpush1.msra.mxu0 0.0
  %808 = vmatprep.subr.mxu0 0.0
  %809 = vmatpush1.msra.mxu0 0.0
  %810 = vmatprep.subr.mxu0 0.0
  %811 = vmatpush1.msra.mxu0 0.0
  %812 = vmatprep.subr.mxu0 0.0
  %813 = vmatpush1.msra.mxu0 0.0
  %814 = vmatprep.subr.mxu0 0.0
  %815 = vmatpush1.msra.mxu0 0.0
  %816 = vmatprep.subr.mxu0 0.0
  %817 = vmatpush1.msra.mxu0 0.0
  %818 = vmatprep.subr.mxu0 0.0
  %819 = vmatpush1.msra.mxu0 0.0
  %820 = vmatprep.subr.mxu0 0.0
  %821 = vmatpush1.msra.mxu0 0.0
  %822 = vmatprep.subr.mxu0 0.0
  %823 = vmatpush1.msra.mxu0 0.0
  %824 = vmatprep.mubr.f32.mxu0 0.0
  %825 = vmatmul.mubr.f32.gmra.mrb[0].mxu0 %v751
  %v826 = vpop.f32.mrb[0].mxu0
  %v827 = vadd.f32 %v395, %v826
  %v828 = vpop.f32.mrb[0].mxu0
  %v829 = vadd.f32 %v399, %v828
  %830 = vdwg.mxu0
  %831 = vmatprep.subr.mxu0 0.0
  %832 = vmatpush1.msra.mxu0 %v338
  %833 = vmatprep.subr.mxu0 0.0
  %834 = vmatpush1.msra.mxu0 %v341
  %835 = vmatprep.subr.mxu0 0.0
  %836 = vmatpush1.msra.mxu0 %v344
  %837 = vmatprep.subr.mxu0 0.0
  %838 = vmatpush1.msra.mxu0 %v347
  %839 = vmatprep.subr.mxu0 0.0
  %840 = vmatpush1.msra.mxu0 %v350
  %841 = vmatprep.subr.mxu0 0.0
  %842 = vmatpush1.msra.mxu0 %v353
  %843 = vmatprep.subr.mxu0 0.0
  %844 = vmatpush1.msra.mxu0 %v356
  %845 = vmatprep.subr.mxu0 0.0
  %846 = vmatpush1.msra.mxu0 %v359
  %847 = vmatprep.subr.mxu0 0.0
  %848 = vmatpush1.msra.mxu0 %v362
  %849 = vmatprep.subr.mxu0 0.0
  %850 = vmatpush1.msra.mxu0 %v365
  %851 = vmatprep.subr.mxu0 0.0
  %852 = vmatpush1.msra.mxu0 %v368
  %853 = vmatprep.subr.mxu0 0.0
  %854 = vmatpush1.msra.mxu0 %v371
  %855 = vmatprep.subr.mxu0 0.0
  %856 = vmatpush1.msra.mxu0 %v374
  %857 = vmatprep.subr.mxu0 0.0
  %858 = vmatpush1.msra.mxu0 %v377
  %859 = vmatprep.subr.mxu0 0.0
  %860 = vmatpush1.msra.mxu0 %v380
  %861 = vmatprep.subr.mxu0 0.0
  %862 = vmatpush1.msra.mxu0 %v383
  %863 = vmatprep.subr.mxu0 0.0
  %864 = vmatpush1.msra.mxu0 0.0
  %865 = vmatprep.subr.mxu0 0.0
  %866 = vmatpush1.msra.mxu0 0.0
  %867 = vmatprep.subr.mxu0 0.0
  %868 = vmatpush1.msra.mxu0 0.0
  %869 = vmatprep.subr.mxu0 0.0
  %870 = vmatpush1.msra.mxu0 0.0
  %871 = vmatprep.subr.mxu0 0.0
  %872 = vmatpush1.msra.mxu0 0.0
  %873 = vmatprep.subr.mxu0 0.0
  %874 = vmatpush1.msra.mxu0 0.0
  %875 = vmatprep.subr.mxu0 0.0
  %876 = vmatpush1.msra.mxu0 0.0
  %877 = vmatprep.subr.mxu0 0.0
  %878 = vmatpush1.msra.mxu0 0.0
  %879 = vmatprep.subr.mxu0 0.0
  %880 = vmatpush1.msra.mxu0 0.0
  %881 = vmatprep.subr.mxu0 0.0
  %882 = vmatpush1.msra.mxu0 0.0
  %883 = vmatprep.subr.mxu0 0.0
  %884 = vmatpush1.msra.mxu0 0.0
  %885 = vmatprep.subr.mxu0 0.0
  %886 = vmatpush1.msra.mxu0 0.0
  %887 = vmatprep.subr.mxu0 0.0
  %888 = vmatpush1.msra.mxu0 0.0
  %889 = vmatprep.subr.mxu0 0.0
  %890 = vmatpush1.msra.mxu0 0.0
  %891 = vmatprep.subr.mxu0 0.0
  %892 = vmatpush1.msra.mxu0 0.0
  %893 = vmatprep.subr.mxu0 0.0
  %894 = vmatpush1.msra.mxu0 0.0
  %895 = vmatprep.mubr.f32.mxu0 0.0
  %896 = vmatmul.mubr.f32.gmra.mrb[0].mxu0 %v751
  %v897 = vpop.f32.mrb[0].mxu0
  %v898 = vadd.f32 %v403, %v897
  %v899 = vpop.f32.mrb[0].mxu0
  %900 = vdwg.mxu0
  %v901 = vadd.f32 %v757, %v827
  %v902 = vxor.u32 %v901, 2147483648
  %v903 = vmul.f32 %v902, 1.442695
  %v904 = vpow.pop %v903
  %v905 = vadd.f32 %v904, 1.0
  %v906 = vrcp.pop %v905
  %v907 = vmul.f32 1.0, %v906
  %v908 = vadd.f32 %v758, %v829
  %v909 = vxor.u32 %v908, 2147483648
  %v910 = vmul.f32 %v909, 1.442695
  %v911 = vpow.pop %v910
  %v912 = vadd.f32 %v911, 1.0
  %v913 = vrcp.pop %v912
  %v914 = vmul.f32 1.0, %v913
  %v915 = vmul.f32 %v907, %v898
  %v916 = vadd.f32 %v759, %v915
  %v917 = vtanh.pop %v916
  %v918 = vsub.f32 %v751, %v917
  %v919 = vmul.f32 %v914, %v918
  %v920 = vadd.f32 %v917, %v919
  %v921 = vstv %s755
  %vm922 = vcmp.lt.s32.totalorder %v921, %v385
  %v923 = vsel %vm922, 1, 0
  %924 = vset.pattern.permute.xlu0 0
  %925 = vperm.xlu0 %924, %v923
  %v926 = vpop.permute.xlu0 %925
  %vm927 = vcmp.eq.s32.totalorder %v926, 1
  %v928 = vsel %vm927, %v920, %v751
  %v929 = vsel %vm927, %v920, 0.0
  %s930 = scalar_lea.vmem %s7, 16
  %931 = vst [vmem:[%s930] sm:$0xff] %v929
  %s932 = sadd.s32 %s387, 3
  %s933 = scalar_lea.vmem [#allocation3], 72
  %v934 = vld [vmem:[%s933] sm:$0xff]
  %v935 = vld [vmem:[%s933 + $0x8] sm:$0xff]
  %v936 = vld [vmem:[%s933 + $0x10] sm:$0xff]
  %937 = vmatprep.subr.mxu0 %v337
  %938 = vmatpush1.msra.mxu0 %v336
  %939 = vmatprep.subr.mxu0 %v340
  %940 = vmatpush1.msra.mxu0 %v339
  %941 = vmatprep.subr.mxu0 %v343
  %942 = vmatpush1.msra.mxu0 %v342
  %943 = vmatprep.subr.mxu0 %v346
  %944 = vmatpush1.msra.mxu0 %v345
  %945 = vmatprep.subr.mxu0 %v349
  %946 = vmatpush1.msra.mxu0 %v348
  %947 = vmatprep.subr.mxu0 %v352
  %948 = vmatpush1.msra.mxu0 %v351
  %949 = vmatprep.subr.mxu0 %v355
  %950 = vmatpush1.msra.mxu0 %v354
  %951 = vmatprep.subr.mxu0 %v358
  %952 = vmatpush1.msra.mxu0 %v357
  %953 = vmatprep.subr.mxu0 %v361
  %954 = vmatpush1.msra.mxu0 %v360
  %955 = vmatprep.subr.mxu0 %v364
  %956 = vmatpush1.msra.mxu0 %v363
  %957 = vmatprep.subr.mxu0 %v367
  %958 = vmatpush1.msra.mxu0 %v366
  %959 = vmatprep.subr.mxu0 %v370
  %960 = vmatpush1.msra.mxu0 %v369
  %961 = vmatprep.subr.mxu0 %v373
  %962 = vmatpush1.msra.mxu0 %v372
  %963 = vmatprep.subr.mxu0 %v376
  %964 = vmatpush1.msra.mxu0 %v375
  %965 = vmatprep.subr.mxu0 %v379
  %966 = vmatpush1.msra.mxu0 %v378
  %967 = vmatprep.subr.mxu0 %v382
  %968 = vmatpush1.msra.mxu0 %v381
  %969 = vmatprep.subr.mxu0 0.0
  %970 = vmatpush1.msra.mxu0 0.0
  %971 = vmatprep.subr.mxu0 0.0
  %972 = vmatpush1.msra.mxu0 0.0
  %973 = vmatprep.subr.mxu0 0.0
  %974 = vmatpush1.msra.mxu0 0.0
  %975 = vmatprep.subr.mxu0 0.0
  %976 = vmatpush1.msra.mxu0 0.0
  %977 = vmatprep.subr.mxu0 0.0
  %978 = vmatpush1.msra.mxu0 0.0
  %979 = vmatprep.subr.mxu0 0.0
  %980 = vmatpush1.msra.mxu0 0.0
  %981 = vmatprep.subr.mxu0 0.0
  %982 = vmatpush1.msra.mxu0 0.0
  %983 = vmatprep.subr.mxu0 0.0
  %984 = vmatpush1.msra.mxu0 0.0
  %985 = vmatprep.subr.mxu0 0.0
  %986 = vmatpush1.msra.mxu0 0.0
  %987 = vmatprep.subr.mxu0 0.0
  %988 = vmatpush1.msra.mxu0 0.0
  %989 = vmatprep.subr.mxu0 0.0
  %990 = vmatpush1.msra.mxu0 0.0
  %991 = vmatprep.subr.mxu0 0.0
  %992 = vmatpush1.msra.mxu0 0.0
  %993 = vmatprep.subr.mxu0 0.0
  %994 = vmatpush1.msra.mxu0 0.0
  %995 = vmatprep.subr.mxu0 0.0
  %996 = vmatpush1.msra.mxu0 0.0
  %997 = vmatprep.subr.mxu0 0.0
  %998 = vmatpush1.msra.mxu0 0.0
  %999 = vmatprep.subr.mxu0 0.0
  %1000 = vmatpush1.msra.mxu0 0.0
  %1001 = vmatprep.mubr.f32.mxu0 0.0
  %1002 = vmatmul.mubr.f32.gmra.mrb[0].mxu0 %v928
  %v1003 = vpop.f32.mrb[0].mxu0
  %v1004 = vadd.f32 %v395, %v1003
  %v1005 = vpop.f32.mrb[0].mxu0
  %v1006 = vadd.f32 %v399, %v1005
  %1007 = vdwg.mxu0
  %1008 = vmatprep.subr.mxu0 0.0
  %1009 = vmatpush1.msra.mxu0 %v338
  %1010 = vmatprep.subr.mxu0 0.0
  %1011 = vmatpush1.msra.mxu0 %v341
  %1012 = vmatprep.subr.mxu0 0.0
  %1013 = vmatpush1.msra.mxu0 %v344
  %1014 = vmatprep.subr.mxu0 0.0
  %1015 = vmatpush1.msra.mxu0 %v347
  %1016 = vmatprep.subr.mxu0 0.0
  %1017 = vmatpush1.msra.mxu0 %v350
  %1018 = vmatprep.subr.mxu0 0.0
  %1019 = vmatpush1.msra.mxu0 %v353
  %1020 = vmatprep.subr.mxu0 0.0
  %1021 = vmatpush1.msra.mxu0 %v356
  %1022 = vmatprep.subr.mxu0 0.0
  %1023 = vmatpush1.msra.mxu0 %v359
  %1024 = vmatprep.subr.mxu0 0.0
  %1025 = vmatpush1.msra.mxu0 %v362
  %1026 = vmatprep.subr.mxu0 0.0
  %1027 = vmatpush1.msra.mxu0 %v365
  %1028 = vmatprep.subr.mxu0 0.0
  %1029 = vmatpush1.msra.mxu0 %v368
  %1030 = vmatprep.subr.mxu0 0.0
  %1031 = vmatpush1.msra.mxu0 %v371
  %1032 = vmatprep.subr.mxu0 0.0
  %1033 = vmatpush1.msra.mxu0 %v374
  %1034 = vmatprep.subr.mxu0 0.0
  %1035 = vmatpush1.msra.mxu0 %v377
  %1036 = vmatprep.subr.mxu0 0.0
  %1037 = vmatpush1.msra.mxu0 %v380
  %1038 = vmatprep.subr.mxu0 0.0
  %1039 = vmatpush1.msra.mxu0 %v383
  %1040 = vmatprep.subr.mxu0 0.0
  %1041 = vmatpush1.msra.mxu0 0.0
  %1042 = vmatprep.subr.mxu0 0.0
  %1043 = vmatpush1.msra.mxu0 0.0
  %1044 = vmatprep.subr.mxu0 0.0
  %1045 = vmatpush1.msra.mxu0 0.0
  %1046 = vmatprep.subr.mxu0 0.0
  %1047 = vmatpush1.msra.mxu0 0.0
  %1048 = vmatprep.subr.mxu0 0.0
  %1049 = vmatpush1.msra.mxu0 0.0
  %1050 = vmatprep.subr.mxu0 0.0
  %1051 = vmatpush1.msra.mxu0 0.0
  %1052 = vmatprep.subr.mxu0 0.0
  %1053 = vmatpush1.msra.mxu0 0.0
  %1054 = vmatprep.subr.mxu0 0.0
  %1055 = vmatpush1.msra.mxu0 0.0
  %1056 = vmatprep.subr.mxu0 0.0
  %1057 = vmatpush1.msra.mxu0 0.0
  %1058 = vmatprep.subr.mxu0 0.0
  %1059 = vmatpush1.msra.mxu0 0.0
  %1060 = vmatprep.subr.mxu0 0.0
  %1061 = vmatpush1.msra.mxu0 0.0
  %1062 = vmatprep.subr.mxu0 0.0
  %1063 = vmatpush1.msra.mxu0 0.0
  %1064 = vmatprep.subr.mxu0 0.0
  %1065 = vmatpush1.msra.mxu0 0.0
  %1066 = vmatprep.subr.mxu0 0.0
  %1067 = vmatpush1.msra.mxu0 0.0
  %1068 = vmatprep.subr.mxu0 0.0
  %1069 = vmatpush1.msra.mxu0 0.0
  %1070 = vmatprep.subr.mxu0 0.0
  %1071 = vmatpush1.msra.mxu0 0.0
  %1072 = vmatprep.mubr.f32.mxu0 0.0
  %1073 = vmatmul.mubr.f32.gmra.mrb[0].mxu0 %v928
  %v1074 = vpop.f32.mrb[0].mxu0
  %v1075 = vadd.f32 %v403, %v1074
  %v1076 = vpop.f32.mrb[0].mxu0
  %1077 = vdwg.mxu0
  %v1078 = vadd.f32 %v934, %v1004
  %v1079 = vxor.u32 %v1078, 2147483648
  %v1080 = vmul.f32 %v1079, 1.442695
  %v1081 = vpow.pop %v1080
  %v1082 = vadd.f32 %v1081, 1.0
  %v1083 = vrcp.pop %v1082
  %v1084 = vmul.f32 1.0, %v1083
  %v1085 = vadd.f32 %v935, %v1006
  %v1086 = vxor.u32 %v1085, 2147483648
  %v1087 = vmul.f32 %v1086, 1.442695
  %v1088 = vpow.pop %v1087
  %v1089 = vadd.f32 %v1088, 1.0
  %v1090 = vrcp.pop %v1089
  %v1091 = vmul.f32 1.0, %v1090
  %v1092 = vmul.f32 %v1084, %v1075
  %v1093 = vadd.f32 %v936, %v1092
  %v1094 = vtanh.pop %v1093
  %v1095 = vsub.f32 %v928, %v1094
  %v1096 = vmul.f32 %v1091, %v1095
  %v1097 = vadd.f32 %v1094, %v1096
  %v1098 = vstv %s932
  %vm1099 = vcmp.lt.s32.totalorder %v1098, %v385
  %v1100 = vsel %vm1099, 1, 0
  %1101 = vset.pattern.permute.xlu0 0
  %1102 = vperm.xlu0 %1101, %v1100
  %v1103 = vpop.permute.xlu0 %1102
  %vm1104 = vcmp.eq.s32.totalorder %v1103, 1
  %v1105 = vsel %vm1104, %v1097, %v928
  %v1106 = vsel %vm1104, %v1097, 0.0
  %s1107 = scalar_lea.vmem %s7, 24
  %1108 = vst [vmem:[%s1107] sm:$0xff] %v1106
  %s1109 = sadd.s32 %s387, 4
  %s1110 = scalar_lea.vmem [#allocation3], 96
  %v1111 = vld [vmem:[%s1110] sm:$0xff]
  %v1112 = vld [vmem:[%s1110 + $0x8] sm:$0xff]
  %v1113 = vld [vmem:[%s1110 + $0x10] sm:$0xff]
  %1114 = vmatprep.subr.mxu0 %v337
  %1115 = vmatpush1.msra.mxu0 %v336
  %1116 = vmatprep.subr.mxu0 %v340
  %1117 = vmatpush1.msra.mxu0 %v339
  %1118 = vmatprep.subr.mxu0 %v343
  %1119 = vmatpush1.msra.mxu0 %v342
  %1120 = vmatprep.subr.mxu0 %v346
  %1121 = vmatpush1.msra.mxu0 %v345
  %1122 = vmatprep.subr.mxu0 %v349
  %1123 = vmatpush1.msra.mxu0 %v348
  %1124 = vmatprep.subr.mxu0 %v352
  %1125 = vmatpush1.msra.mxu0 %v351
  %1126 = vmatprep.subr.mxu0 %v355
  %1127 = vmatpush1.msra.mxu0 %v354
  %1128 = vmatprep.subr.mxu0 %v358
  %1129 = vmatpush1.msra.mxu0 %v357
  %1130 = vmatprep.subr.mxu0 %v361
  %1131 = vmatpush1.msra.mxu0 %v360
  %1132 = vmatprep.subr.mxu0 %v364
  %1133 = vmatpush1.msra.mxu0 %v363
  %1134 = vmatprep.subr.mxu0 %v367
  %1135 = vmatpush1.msra.mxu0 %v366
  %1136 = vmatprep.subr.mxu0 %v370
  %1137 = vmatpush1.msra.mxu0 %v369
  %1138 = vmatprep.subr.mxu0 %v373
  %1139 = vmatpush1.msra.mxu0 %v372
  %1140 = vmatprep.subr.mxu0 %v376
  %1141 = vmatpush1.msra.mxu0 %v375
  %1142 = vmatprep.subr.mxu0 %v379
  %1143 = vmatpush1.msra.mxu0 %v378
  %1144 = vmatprep.subr.mxu0 %v382
  %1145 = vmatpush1.msra.mxu0 %v381
  %1146 = vmatprep.subr.mxu0 0.0
  %1147 = vmatpush1.msra.mxu0 0.0
  %1148 = vmatprep.subr.mxu0 0.0
  %1149 = vmatpush1.msra.mxu0 0.0
  %1150 = vmatprep.subr.mxu0 0.0
  %1151 = vmatpush1.msra.mxu0 0.0
  %1152 = vmatprep.subr.mxu0 0.0
  %1153 = vmatpush1.msra.mxu0 0.0
  %1154 = vmatprep.subr.mxu0 0.0
  %1155 = vmatpush1.msra.mxu0 0.0
  %1156 = vmatprep.subr.mxu0 0.0
  %1157 = vmatpush1.msra.mxu0 0.0
  %1158 = vmatprep.subr.mxu0 0.0
  %1159 = vmatpush1.msra.mxu0 0.0
  %1160 = vmatprep.subr.mxu0 0.0
  %1161 = vmatpush1.msra.mxu0 0.0
  %1162 = vmatprep.subr.mxu0 0.0
  %1163 = vmatpush1.msra.mxu0 0.0
  %1164 = vmatprep.subr.mxu0 0.0
  %1165 = vmatpush1.msra.mxu0 0.0
  %1166 = vmatprep.subr.mxu0 0.0
  %1167 = vmatpush1.msra.mxu0 0.0
  %1168 = vmatprep.subr.mxu0 0.0
  %1169 = vmatpush1.msra.mxu0 0.0
  %1170 = vmatprep.subr.mxu0 0.0
  %1171 = vmatpush1.msra.mxu0 0.0
  %1172 = vmatprep.subr.mxu0 0.0
  %1173 = vmatpush1.msra.mxu0 0.0
  %1174 = vmatprep.subr.mxu0 0.0
  %1175 = vmatpush1.msra.mxu0 0.0
  %1176 = vmatprep.subr.mxu0 0.0
  %1177 = vmatpush1.msra.mxu0 0.0
  %1178 = vmatprep.mubr.f32.mxu0 0.0
  %1179 = vmatmul.mubr.f32.gmra.mrb[0].mxu0 %v1105
  %v1180 = vpop.f32.mrb[0].mxu0
  %v1181 = vadd.f32 %v395, %v1180
  %v1182 = vpop.f32.mrb[0].mxu0
  %v1183 = vadd.f32 %v399, %v1182
  %1184 = vdwg.mxu0
  %1185 = vmatprep.subr.mxu0 0.0
  %1186 = vmatpush1.msra.mxu0 %v338
  %1187 = vmatprep.subr.mxu0 0.0
  %1188 = vmatpush1.msra.mxu0 %v341
  %1189 = vmatprep.subr.mxu0 0.0
  %1190 = vmatpush1.msra.mxu0 %v344
  %1191 = vmatprep.subr.mxu0 0.0
  %1192 = vmatpush1.msra.mxu0 %v347
  %1193 = vmatprep.subr.mxu0 0.0
  %1194 = vmatpush1.msra.mxu0 %v350
  %1195 = vmatprep.subr.mxu0 0.0
  %1196 = vmatpush1.msra.mxu0 %v353
  %1197 = vmatprep.subr.mxu0 0.0
  %1198 = vmatpush1.msra.mxu0 %v356
  %1199 = vmatprep.subr.mxu0 0.0
  %1200 = vmatpush1.msra.mxu0 %v359
  %1201 = vmatprep.subr.mxu0 0.0
  %1202 = vmatpush1.msra.mxu0 %v362
  %1203 = vmatprep.subr.mxu0 0.0
  %1204 = vmatpush1.msra.mxu0 %v365
  %1205 = vmatprep.subr.mxu0 0.0
  %1206 = vmatpush1.msra.mxu0 %v368
  %1207 = vmatprep.subr.mxu0 0.0
  %1208 = vmatpush1.msra.mxu0 %v371
  %1209 = vmatprep.subr.mxu0 0.0
  %1210 = vmatpush1.msra.mxu0 %v374
  %1211 = vmatprep.subr.mxu0 0.0
  %1212 = vmatpush1.msra.mxu0 %v377
  %1213 = vmatprep.subr.mxu0 0.0
  %1214 = vmatpush1.msra.mxu0 %v380
  %1215 = vmatprep.subr.mxu0 0.0
  %1216 = vmatpush1.msra.mxu0 %v383
  %1217 = vmatprep.subr.mxu0 0.0
  %1218 = vmatpush1.msra.mxu0 0.0
  %1219 = vmatprep.subr.mxu0 0.0
  %1220 = vmatpush1.msra.mxu0 0.0
  %1221 = vmatprep.subr.mxu0 0.0
  %1222 = vmatpush1.msra.mxu0 0.0
  %1223 = vmatprep.subr.mxu0 0.0
  %1224 = vmatpush1.msra.mxu0 0.0
  %1225 = vmatprep.subr.mxu0 0.0
  %1226 = vmatpush1.msra.mxu0 0.0
  %1227 = vmatprep.subr.mxu0 0.0
  %1228 = vmatpush1.msra.mxu0 0.0
  %1229 = vmatprep.subr.mxu0 0.0
  %1230 = vmatpush1.msra.mxu0 0.0
  %1231 = vmatprep.subr.mxu0 0.0
  %1232 = vmatpush1.msra.mxu0 0.0
  %1233 = vmatprep.subr.mxu0 0.0
  %1234 = vmatpush1.msra.mxu0 0.0
  %1235 = vmatprep.subr.mxu0 0.0
  %1236 = vmatpush1.msra.mxu0 0.0
  %1237 = vmatprep.subr.mxu0 0.0
  %1238 = vmatpush1.msra.mxu0 0.0
  %1239 = vmatprep.subr.mxu0 0.0
  %1240 = vmatpush1.msra.mxu0 0.0
  %1241 = vmatprep.subr.mxu0 0.0
  %1242 = vmatpush1.msra.mxu0 0.0
  %1243 = vmatprep.subr.mxu0 0.0
  %1244 = vmatpush1.msra.mxu0 0.0
  %1245 = vmatprep.subr.mxu0 0.0
  %1246 = vmatpush1.msra.mxu0 0.0
  %1247 = vmatprep.subr.mxu0 0.0
  %1248 = vmatpush1.msra.mxu0 0.0
  %1249 = vmatprep.mubr.f32.mxu0 0.0
  %1250 = vmatmul.mubr.f32.gmra.mrb[0].mxu0 %v1105
  %v1251 = vpop.f32.mrb[0].mxu0
  %v1252 = vadd.f32 %v403, %v1251
  %v1253 = vpop.f32.mrb[0].mxu0
  %1254 = vdwg.mxu0
  %v1255 = vadd.f32 %v1111, %v1181
  %v1256 = vxor.u32 %v1255, 2147483648
  %v1257 = vmul.f32 %v1256, 1.442695
  %v1258 = vpow.pop %v1257
  %v1259 = vadd.f32 %v1258, 1.0
  %v1260 = vrcp.pop %v1259
  %v1261 = vmul.f32 1.0, %v1260
  %v1262 = vadd.f32 %v1112, %v1183
  %v1263 = vxor.u32 %v1262, 2147483648
  %v1264 = vmul.f32 %v1263, 1.442695
  %v1265 = vpow.pop %v1264
  %v1266 = vadd.f32 %v1265, 1.0
  %v1267 = vrcp.pop %v1266
  %v1268 = vmul.f32 1.0, %v1267
  %v1269 = vmul.f32 %v1261, %v1252
  %v1270 = vadd.f32 %v1113, %v1269
  %v1271 = vtanh.pop %v1270
  %v1272 = vsub.f32 %v1105, %v1271
  %v1273 = vmul.f32 %v1268, %v1272
  %v1274 = vadd.f32 %v1271, %v1273
  %v1275 = vstv %s1109
  %vm1276 = vcmp.lt.s32.totalorder %v1275, %v385
  %v1277 = vsel %vm1276, 1, 0
  %1278 = vset.pattern.permute.xlu0 0
  %1279 = vperm.xlu0 %1278, %v1277
  %v1280 = vpop.permute.xlu0 %1279
  %vm1281 = vcmp.eq.s32.totalorder %v1280, 1
  %v1282 = vsel %vm1281, %v1274, %v1105
  %v1283 = vsel %vm1281, %v1274, 0.0
  %s1284 = scalar_lea.vmem %s7, 32
  %1285 = vst [vmem:[%s1284] sm:$0xff] %v1283
  %s1286 = sadd.s32 %s387, 5
  %s1287 = scalar_lea.vmem [#allocation3], 120
  %v1288 = vld [vmem:[%s1287] sm:$0xff]
  %v1289 = vld [vmem:[%s1287 + $0x8] sm:$0xff]
  %v1290 = vld [vmem:[%s1287 + $0x10] sm:$0xff]
  %1291 = vmatprep.subr.mxu0 %v337
  %1292 = vmatpush1.msra.mxu0 %v336
  %1293 = vmatprep.subr.mxu0 %v340
  %1294 = vmatpush1.msra.mxu0 %v339
  %1295 = vmatprep.subr.mxu0 %v343
  %1296 = vmatpush1.msra.mxu0 %v342
  %1297 = vmatprep.subr.mxu0 %v346
  %1298 = vmatpush1.msra.mxu0 %v345
  %1299 = vmatprep.subr.mxu0 %v349
  %1300 = vmatpush1.msra.mxu0 %v348
  %1301 = vmatprep.subr.mxu0 %v352
  %1302 = vmatpush1.msra.mxu0 %v351
  %1303 = vmatprep.subr.mxu0 %v355
  %1304 = vmatpush1.msra.mxu0 %v354
  %1305 = vmatprep.subr.mxu0 %v358
  %1306 = vmatpush1.msra.mxu0 %v357
  %1307 = vmatprep.subr.mxu0 %v361
  %1308 = vmatpush1.msra.mxu0 %v360
  %1309 = vmatprep.subr.mxu0 %v364
  %1310 = vmatpush1.msra.mxu0 %v363
  %1311 = vmatprep.subr.mxu0 %v367
  %1312 = vmatpush1.msra.mxu0 %v366
  %1313 = vmatprep.subr.mxu0 %v370
  %1314 = vmatpush1.msra.mxu0 %v369
  %1315 = vmatprep.subr.mxu0 %v373
  %1316 = vmatpush1.msra.mxu0 %v372
  %1317 = vmatprep.subr.mxu0 %v376
  %1318 = vmatpush1.msra.mxu0 %v375
  %1319 = vmatprep.subr.mxu0 %v379
  %1320 = vmatpush1.msra.mxu0 %v378
  %1321 = vmatprep.subr.mxu0 %v382
  %1322 = vmatpush1.msra.mxu0 %v381
  %1323 = vmatprep.subr.mxu0 0.0
  %1324 = vmatpush1.msra.mxu0 0.0
  %1325 = vmatprep.subr.mxu0 0.0
  %1326 = vmatpush1.msra.mxu0 0.0
  %1327 = vmatprep.subr.mxu0 0.0
  %1328 = vmatpush1.msra.mxu0 0.0
  %1329 = vmatprep.subr.mxu0 0.0
  %1330 = vmatpush1.msra.mxu0 0.0
  %1331 = vmatprep.subr.mxu0 0.0
  %1332 = vmatpush1.msra.mxu0 0.0
  %1333 = vmatprep.subr.mxu0 0.0
  %1334 = vmatpush1.msra.mxu0 0.0
  %1335 = vmatprep.subr.mxu0 0.0
  %1336 = vmatpush1.msra.mxu0 0.0
  %1337 = vmatprep.subr.mxu0 0.0
  %1338 = vmatpush1.msra.mxu0 0.0
  %1339 = vmatprep.subr.mxu0 0.0
  %1340 = vmatpush1.msra.mxu0 0.0
  %1341 = vmatprep.subr.mxu0 0.0
  %1342 = vmatpush1.msra.mxu0 0.0
  %1343 = vmatprep.subr.mxu0 0.0
  %1344 = vmatpush1.msra.mxu0 0.0
  %1345 = vmatprep.subr.mxu0 0.0
  %1346 = vmatpush1.msra.mxu0 0.0
  %1347 = vmatprep.subr.mxu0 0.0
  %1348 = vmatpush1.msra.mxu0 0.0
  %1349 = vmatprep.subr.mxu0 0.0
  %1350 = vmatpush1.msra.mxu0 0.0
  %1351 = vmatprep.subr.mxu0 0.0
  %1352 = vmatpush1.msra.mxu0 0.0
  %1353 = vmatprep.subr.mxu0 0.0
  %1354 = vmatpush1.msra.mxu0 0.0
  %1355 = vmatprep.mubr.f32.mxu0 0.0
  %1356 = vmatmul.mubr.f32.gmra.mrb[0].mxu0 %v1282
  %v1357 = vpop.f32.mrb[0].mxu0
  %v1358 = vadd.f32 %v395, %v1357
  %v1359 = vpop.f32.mrb[0].mxu0
  %v1360 = vadd.f32 %v399, %v1359
  %1361 = vdwg.mxu0
  %1362 = vmatprep.subr.mxu0 0.0
  %1363 = vmatpush1.msra.mxu0 %v338
  %1364 = vmatprep.subr.mxu0 0.0
  %1365 = vmatpush1.msra.mxu0 %v341
  %1366 = vmatprep.subr.mxu0 0.0
  %1367 = vmatpush1.msra.mxu0 %v344
  %1368 = vmatprep.subr.mxu0 0.0
  %1369 = vmatpush1.msra.mxu0 %v347
  %1370 = vmatprep.subr.mxu0 0.0
  %1371 = vmatpush1.msra.mxu0 %v350
  %1372 = vmatprep.subr.mxu0 0.0
  %1373 = vmatpush1.msra.mxu0 %v353
  %1374 = vmatprep.subr.mxu0 0.0
  %1375 = vmatpush1.msra.mxu0 %v356
  %1376 = vmatprep.subr.mxu0 0.0
  %1377 = vmatpush1.msra.mxu0 %v359
  %1378 = vmatprep.subr.mxu0 0.0
  %1379 = vmatpush1.msra.mxu0 %v362
  %1380 = vmatprep.subr.mxu0 0.0
  %1381 = vmatpush1.msra.mxu0 %v365
  %1382 = vmatprep.subr.mxu0 0.0
  %1383 = vmatpush1.msra.mxu0 %v368
  %1384 = vmatprep.subr.mxu0 0.0
  %1385 = vmatpush1.msra.mxu0 %v371
  %1386 = vmatprep.subr.mxu0 0.0
  %1387 = vmatpush1.msra.mxu0 %v374
  %1388 = vmatprep.subr.mxu0 0.0
  %1389 = vmatpush1.msra.mxu0 %v377
  %1390 = vmatprep.subr.mxu0 0.0
  %1391 = vmatpush1.msra.mxu0 %v380
  %1392 = vmatprep.subr.mxu0 0.0
  %1393 = vmatpush1.msra.mxu0 %v383
  %1394 = vmatprep.subr.mxu0 0.0
  %1395 = vmatpush1.msra.mxu0 0.0
  %1396 = vmatprep.subr.mxu0 0.0
  %1397 = vmatpush1.msra.mxu0 0.0
  %1398 = vmatprep.subr.mxu0 0.0
  %1399 = vmatpush1.msra.mxu0 0.0
  %1400 = vmatprep.subr.mxu0 0.0
  %1401 = vmatpush1.msra.mxu0 0.0
  %1402 = vmatprep.subr.mxu0 0.0
  %1403 = vmatpush1.msra.mxu0 0.0
  %1404 = vmatprep.subr.mxu0 0.0
  %1405 = vmatpush1.msra.mxu0 0.0
  %1406 = vmatprep.subr.mxu0 0.0
  %1407 = vmatpush1.msra.mxu0 0.0
  %1408 = vmatprep.subr.mxu0 0.0
  %1409 = vmatpush1.msra.mxu0 0.0
  %1410 = vmatprep.subr.mxu0 0.0
  %1411 = vmatpush1.msra.mxu0 0.0
  %1412 = vmatprep.subr.mxu0 0.0
  %1413 = vmatpush1.msra.mxu0 0.0
  %1414 = vmatprep.subr.mxu0 0.0
  %1415 = vmatpush1.msra.mxu0 0.0
  %1416 = vmatprep.subr.mxu0 0.0
  %1417 = vmatpush1.msra.mxu0 0.0
  %1418 = vmatprep.subr.mxu0 0.0
  %1419 = vmatpush1.msra.mxu0 0.0
  %1420 = vmatprep.subr.mxu0 0.0
  %1421 = vmatpush1.msra.mxu0 0.0
  %1422 = vmatprep.subr.mxu0 0.0
  %1423 = vmatpush1.msra.mxu0 0.0
  %1424 = vmatprep.subr.mxu0 0.0
  %1425 = vmatpush1.msra.mxu0 0.0
  %1426 = vmatprep.mubr.f32.mxu0 0.0
  %1427 = vmatmul.mubr.f32.gmra.mrb[0].mxu0 %v1282
  %v1428 = vpop.f32.mrb[0].mxu0
  %v1429 = vadd.f32 %v403, %v1428
  %v1430 = vpop.f32.mrb[0].mxu0
  %1431 = vdwg.mxu0
  %v1432 = vadd.f32 %v1288, %v1358
  %v1433 = vxor.u32 %v1432, 2147483648
  %v1434 = vmul.f32 %v1433, 1.442695
  %v1435 = vpow.pop %v1434
  %v1436 = vadd.f32 %v1435, 1.0
  %v1437 = vrcp.pop %v1436
  %v1438 = vmul.f32 1.0, %v1437
  %v1439 = vadd.f32 %v1289, %v1360
  %v1440 = vxor.u32 %v1439, 2147483648
  %v1441 = vmul.f32 %v1440, 1.442695
  %v1442 = vpow.pop %v1441
  %v1443 = vadd.f32 %v1442, 1.0
  %v1444 = vrcp.pop %v1443
  %v1445 = vmul.f32 1.0, %v1444
  %v1446 = vmul.f32 %v1438, %v1429
  %v1447 = vadd.f32 %v1290, %v1446
  %v1448 = vtanh.pop %v1447
  %v1449 = vsub.f32 %v1282, %v1448
  %v1450 = vmul.f32 %v1445, %v1449
  %v1451 = vadd.f32 %v1448, %v1450
  %v1452 = vstv %s1286
  %vm1453 = vcmp.lt.s32.totalorder %v1452, %v385
  %v1454 = vsel %vm1453, 1, 0
  %1455 = vset.pattern.permute.xlu0 0
  %1456 = vperm.xlu0 %1455, %v1454
  %v1457 = vpop.permute.xlu0 %1456
  %vm1458 = vcmp.eq.s32.totalorder %v1457, 1
  %v1459 = vsel %vm1458, %v1451, %v1282
  %v1460 = vsel %vm1458, %v1451, 0.0
  %s1461 = scalar_lea.vmem %s7, 40
  %1462 = vst [vmem:[%s1461] sm:$0xff] %v1460
  %s1463 = sadd.s32 %s387, 6
  %s1464 = scalar_lea.vmem [#allocation3], 144
  %v1465 = vld [vmem:[%s1464] sm:$0xff]
  %v1466 = vld [vmem:[%s1464 + $0x8] sm:$0xff]
  %v1467 = vld [vmem:[%s1464 + $0x10] sm:$0xff]
  %1468 = vmatprep.subr.mxu0 %v337
  %1469 = vmatpush1.msra.mxu0 %v336
  %1470 = vmatprep.subr.mxu0 %v340
  %1471 = vmatpush1.msra.mxu0 %v339
  %1472 = vmatprep.subr.mxu0 %v343
  %1473 = vmatpush1.msra.mxu0 %v342
  %1474 = vmatprep.subr.mxu0 %v346
  %1475 = vmatpush1.msra.mxu0 %v345
  %1476 = vmatprep.subr.mxu0 %v349
  %1477 = vmatpush1.msra.mxu0 %v348
  %1478 = vmatprep.subr.mxu0 %v352
  %1479 = vmatpush1.msra.mxu0 %v351
  %1480 = vmatprep.subr.mxu0 %v355
  %1481 = vmatpush1.msra.mxu0 %v354
  %1482 = vmatprep.subr.mxu0 %v358
  %1483 = vmatpush1.msra.mxu0 %v357
  %1484 = vmatprep.subr.mxu0 %v361
  %1485 = vmatpush1.msra.mxu0 %v360
  %1486 = vmatprep.subr.mxu0 %v364
  %1487 = vmatpush1.msra.mxu0 %v363
  %1488 = vmatprep.subr.mxu0 %v367
  %1489 = vmatpush1.msra.mxu0 %v366
  %1490 = vmatprep.subr.mxu0 %v370
  %1491 = vmatpush1.msra.mxu0 %v369
  %1492 = vmatprep.subr.mxu0 %v373
  %1493 = vmatpush1.msra.mxu0 %v372
  %1494 = vmatprep.subr.mxu0 %v376
  %1495 = vmatpush1.msra.mxu0 %v375
  %1496 = vmatprep.subr.mxu0 %v379
  %1497 = vmatpush1.msra.mxu0 %v378
  %1498 = vmatprep.subr.mxu0 %v382
  %1499 = vmatpush1.msra.mxu0 %v381
  %1500 = vmatprep.subr.mxu0 0.0
  %1501 = vmatpush1.msra.mxu0 0.0
  %1502 = vmatprep.subr.mxu0 0.0
  %1503 = vmatpush1.msra.mxu0 0.0
  %1504 = vmatprep.subr.mxu0 0.0
  %1505 = vmatpush1.msra.mxu0 0.0
  %1506 = vmatprep.subr.mxu0 0.0
  %1507 = vmatpush1.msra.mxu0 0.0
  %1508 = vmatprep.subr.mxu0 0.0
  %1509 = vmatpush1.msra.mxu0 0.0
  %1510 = vmatprep.subr.mxu0 0.0
  %1511 = vmatpush1.msra.mxu0 0.0
  %1512 = vmatprep.subr.mxu0 0.0
  %1513 = vmatpush1.msra.mxu0 0.0
  %1514 = vmatprep.subr.mxu0 0.0
  %1515 = vmatpush1.msra.mxu0 0.0
  %1516 = vmatprep.subr.mxu0 0.0
  %1517 = vmatpush1.msra.mxu0 0.0
  %1518 = vmatprep.subr.mxu0 0.0
  %1519 = vmatpush1.msra.mxu0 0.0
  %1520 = vmatprep.subr.mxu0 0.0
  %1521 = vmatpush1.msra.mxu0 0.0
  %1522 = vmatprep.subr.mxu0 0.0
  %1523 = vmatpush1.msra.mxu0 0.0
  %1524 = vmatprep.subr.mxu0 0.0
  %1525 = vmatpush1.msra.mxu0 0.0
  %1526 = vmatprep.subr.mxu0 0.0
  %1527 = vmatpush1.msra.mxu0 0.0
  %1528 = vmatprep.subr.mxu0 0.0
  %1529 = vmatpush1.msra.mxu0 0.0
  %1530 = vmatprep.subr.mxu0 0.0
  %1531 = vmatpush1.msra.mxu0 0.0
  %1532 = vmatprep.mubr.f32.mxu0 0.0
  %1533 = vmatmul.mubr.f32.gmra.mrb[0].mxu0 %v1459
  %v1534 = vpop.f32.mrb[0].mxu0
  %v1535 = vadd.f32 %v395, %v1534
  %v1536 = vpop.f32.mrb[0].mxu0
  %v1537 = vadd.f32 %v399, %v1536
  %1538 = vdwg.mxu0
  %1539 = vmatprep.subr.mxu0 0.0
  %1540 = vmatpush1.msra.mxu0 %v338
  %1541 = vmatprep.subr.mxu0 0.0
  %1542 = vmatpush1.msra.mxu0 %v341
  %1543 = vmatprep.subr.mxu0 0.0
  %1544 = vmatpush1.msra.mxu0 %v344
  %1545 = vmatprep.subr.mxu0 0.0
  %1546 = vmatpush1.msra.mxu0 %v347
  %1547 = vmatprep.subr.mxu0 0.0
  %1548 = vmatpush1.msra.mxu0 %v350
  %1549 = vmatprep.subr.mxu0 0.0
  %1550 = vmatpush1.msra.mxu0 %v353
  %1551 = vmatprep.subr.mxu0 0.0
  %1552 = vmatpush1.msra.mxu0 %v356
  %1553 = vmatprep.subr.mxu0 0.0
  %1554 = vmatpush1.msra.mxu0 %v359
  %1555 = vmatprep.subr.mxu0 0.0
  %1556 = vmatpush1.msra.mxu0 %v362
  %1557 = vmatprep.subr.mxu0 0.0
  %1558 = vmatpush1.msra.mxu0 %v365
  %1559 = vmatprep.subr.mxu0 0.0
  %1560 = vmatpush1.msra.mxu0 %v368
  %1561 = vmatprep.subr.mxu0 0.0
  %1562 = vmatpush1.msra.mxu0 %v371
  %1563 = vmatprep.subr.mxu0 0.0
  %1564 = vmatpush1.msra.mxu0 %v374
  %1565 = vmatprep.subr.mxu0 0.0
  %1566 = vmatpush1.msra.mxu0 %v377
  %1567 = vmatprep.subr.mxu0 0.0
  %1568 = vmatpush1.msra.mxu0 %v380
  %1569 = vmatprep.subr.mxu0 0.0
  %1570 = vmatpush1.msra.mxu0 %v383
  %1571 = vmatprep.subr.mxu0 0.0
  %1572 = vmatpush1.msra.mxu0 0.0
  %1573 = vmatprep.subr.mxu0 0.0
  %1574 = vmatpush1.msra.mxu0 0.0
  %1575 = vmatprep.subr.mxu0 0.0
  %1576 = vmatpush1.msra.mxu0 0.0
  %1577 = vmatprep.subr.mxu0 0.0
  %1578 = vmatpush1.msra.mxu0 0.0
  %1579 = vmatprep.subr.mxu0 0.0
  %1580 = vmatpush1.msra.mxu0 0.0
  %1581 = vmatprep.subr.mxu0 0.0
  %1582 = vmatpush1.msra.mxu0 0.0
  %1583 = vmatprep.subr.mxu0 0.0
  %1584 = vmatpush1.msra.mxu0 0.0
  %1585 = vmatprep.subr.mxu0 0.0
  %1586 = vmatpush1.msra.mxu0 0.0
  %1587 = vmatprep.subr.mxu0 0.0
  %1588 = vmatpush1.msra.mxu0 0.0
  %1589 = vmatprep.subr.mxu0 0.0
  %1590 = vmatpush1.msra.mxu0 0.0
  %1591 = vmatprep.subr.mxu0 0.0
  %1592 = vmatpush1.msra.mxu0 0.0
  %1593 = vmatprep.subr.mxu0 0.0
  %1594 = vmatpush1.msra.mxu0 0.0
  %1595 = vmatprep.subr.mxu0 0.0
  %1596 = vmatpush1.msra.mxu0 0.0
  %1597 = vmatprep.subr.mxu0 0.0
  %1598 = vmatpush1.msra.mxu0 0.0
  %1599 = vmatprep.subr.mxu0 0.0
  %1600 = vmatpush1.msra.mxu0 0.0
  %1601 = vmatprep.subr.mxu0 0.0
  %1602 = vmatpush1.msra.mxu0 0.0
  %1603 = vmatprep.mubr.f32.mxu0 0.0
  %1604 = vmatmul.mubr.f32.gmra.mrb[0].mxu0 %v1459
  %v1605 = vpop.f32.mrb[0].mxu0
  %v1606 = vadd.f32 %v403, %v1605
  %v1607 = vpop.f32.mrb[0].mxu0
  %1608 = vdwg.mxu0
  %v1609 = vadd.f32 %v1465, %v1535
  %v1610 = vxor.u32 %v1609, 2147483648
  %v1611 = vmul.f32 %v1610, 1.442695
  %v1612 = vpow.pop %v1611
  %v1613 = vadd.f32 %v1612, 1.0
  %v1614 = vrcp.pop %v1613
  %v1615 = vmul.f32 1.0, %v1614
  %v1616 = vadd.f32 %v1466, %v1537
  %v1617 = vxor.u32 %v1616, 2147483648
  %v1618 = vmul.f32 %v1617, 1.442695
  %v1619 = vpow.pop %v1618
  %v1620 = vadd.f32 %v1619, 1.0
  %v1621 = vrcp.pop %v1620
  %v1622 = vmul.f32 1.0, %v1621
  %v1623 = vmul.f32 %v1615, %v1606
  %v1624 = vadd.f32 %v1467, %v1623
  %v1625 = vtanh.pop %v1624
  %v1626 = vsub.f32 %v1459, %v1625
  %v1627 = vmul.f32 %v1622, %v1626
  %v1628 = vadd.f32 %v1625, %v1627
  %v1629 = vstv %s1463
  %vm1630 = vcmp.lt.s32.totalorder %v1629, %v385
  %v1631 = vsel %vm1630, 1, 0
  %1632 = vset.pattern.permute.xlu0 0
  %1633 = vperm.xlu0 %1632, %v1631
  %v1634 = vpop.permute.xlu0 %1633
  %vm1635 = vcmp.eq.s32.totalorder %v1634, 1
  %v1636 = vsel %vm1635, %v1628, %v1459
  %v1637 = vsel %vm1635, %v1628, 0.0
  %s1638 = scalar_lea.vmem %s7, 48
  %1639 = vst [vmem:[%s1638] sm:$0xff] %v1637
  %s1640 = sadd.s32 %s387, 7
  %s1641 = scalar_lea.vmem [#allocation3], 168
  %v1642 = vld [vmem:[%s1641] sm:$0xff]
  %v1643 = vld [vmem:[%s1641 + $0x8] sm:$0xff]
  %v1644 = vld [vmem:[%s1641 + $0x10] sm:$0xff]
  %1645 = vmatprep.subr.mxu0 %v337
  %1646 = vmatpush1.msra.mxu0 %v336
  %1647 = vmatprep.subr.mxu0 %v340
  %1648 = vmatpush1.msra.mxu0 %v339
  %1649 = vmatprep.subr.mxu0 %v343
  %1650 = vmatpush1.msra.mxu0 %v342
  %1651 = vmatprep.subr.mxu0 %v346
  %1652 = vmatpush1.msra.mxu0 %v345
  %1653 = vmatprep.subr.mxu0 %v349
  %1654 = vmatpush1.msra.mxu0 %v348
  %1655 = vmatprep.subr.mxu0 %v352
  %1656 = vmatpush1.msra.mxu0 %v351
  %1657 = vmatprep.subr.mxu0 %v355
  %1658 = vmatpush1.msra.mxu0 %v354
  %1659 = vmatprep.subr.mxu0 %v358
  %1660 = vmatpush1.msra.mxu0 %v357
  %1661 = vmatprep.subr.mxu0 %v361
  %1662 = vmatpush1.msra.mxu0 %v360
  %1663 = vmatprep.subr.mxu0 %v364
  %1664 = vmatpush1.msra.mxu0 %v363
  %1665 = vmatprep.subr.mxu0 %v367
  %1666 = vmatpush1.msra.mxu0 %v366
  %1667 = vmatprep.subr.mxu0 %v370
  %1668 = vmatpush1.msra.mxu0 %v369
  %1669 = vmatprep.subr.mxu0 %v373
  %1670 = vmatpush1.msra.mxu0 %v372
  %1671 = vmatprep.subr.mxu0 %v376
  %1672 = vmatpush1.msra.mxu0 %v375
  %1673 = vmatprep.subr.mxu0 %v379
  %1674 = vmatpush1.msra.mxu0 %v378
  %1675 = vmatprep.subr.mxu0 %v382
  %1676 = vmatpush1.msra.mxu0 %v381
  %1677 = vmatprep.subr.mxu0 0.0
  %1678 = vmatpush1.msra.mxu0 0.0
  %1679 = vmatprep.subr.mxu0 0.0
  %1680 = vmatpush1.msra.mxu0 0.0
  %1681 = vmatprep.subr.mxu0 0.0
  %1682 = vmatpush1.msra.mxu0 0.0
  %1683 = vmatprep.subr.mxu0 0.0
  %1684 = vmatpush1.msra.mxu0 0.0
  %1685 = vmatprep.subr.mxu0 0.0
  %1686 = vmatpush1.msra.mxu0 0.0
  %1687 = vmatprep.subr.mxu0 0.0
  %1688 = vmatpush1.msra.mxu0 0.0
  %1689 = vmatprep.subr.mxu0 0.0
  %1690 = vmatpush1.msra.mxu0 0.0
  %1691 = vmatprep.subr.mxu0 0.0
  %1692 = vmatpush1.msra.mxu0 0.0
  %1693 = vmatprep.subr.mxu0 0.0
  %1694 = vmatpush1.msra.mxu0 0.0
  %1695 = vmatprep.subr.mxu0 0.0
  %1696 = vmatpush1.msra.mxu0 0.0
  %1697 = vmatprep.subr.mxu0 0.0
  %1698 = vmatpush1.msra.mxu0 0.0
  %1699 = vmatprep.subr.mxu0 0.0
  %1700 = vmatpush1.msra.mxu0 0.0
  %1701 = vmatprep.subr.mxu0 0.0
  %1702 = vmatpush1.msra.mxu0 0.0
  %1703 = vmatprep.subr.mxu0 0.0
  %1704 = vmatpush1.msra.mxu0 0.0
  %1705 = vmatprep.subr.mxu0 0.0
  %1706 = vmatpush1.msra.mxu0 0.0
  %1707 = vmatprep.subr.mxu0 0.0
  %1708 = vmatpush1.msra.mxu0 0.0
  %1709 = vmatprep.mubr.f32.mxu0 0.0
  %1710 = vmatmul.mubr.f32.gmra.mrb[0].mxu0 %v1636
  %v1711 = vpop.f32.mrb[0].mxu0
  %v1712 = vadd.f32 %v395, %v1711
  %v1713 = vpop.f32.mrb[0].mxu0
  %v1714 = vadd.f32 %v399, %v1713
  %1715 = vdwg.mxu0
  %1716 = vmatprep.subr.mxu0 0.0
  %1717 = vmatpush1.msra.mxu0 %v338
  %1718 = vmatprep.subr.mxu0 0.0
  %1719 = vmatpush1.msra.mxu0 %v341
  %1720 = vmatprep.subr.mxu0 0.0
  %1721 = vmatpush1.msra.mxu0 %v344
  %1722 = vmatprep.subr.mxu0 0.0
  %1723 = vmatpush1.msra.mxu0 %v347
  %1724 = vmatprep.subr.mxu0 0.0
  %1725 = vmatpush1.msra.mxu0 %v350
  %1726 = vmatprep.subr.mxu0 0.0
  %1727 = vmatpush1.msra.mxu0 %v353
  %1728 = vmatprep.subr.mxu0 0.0
  %1729 = vmatpush1.msra.mxu0 %v356
  %1730 = vmatprep.subr.mxu0 0.0
  %1731 = vmatpush1.msra.mxu0 %v359
  %1732 = vmatprep.subr.mxu0 0.0
  %1733 = vmatpush1.msra.mxu0 %v362
  %1734 = vmatprep.subr.mxu0 0.0
  %1735 = vmatpush1.msra.mxu0 %v365
  %1736 = vmatprep.subr.mxu0 0.0
  %1737 = vmatpush1.msra.mxu0 %v368
  %1738 = vmatprep.subr.mxu0 0.0
  %1739 = vmatpush1.msra.mxu0 %v371
  %1740 = vmatprep.subr.mxu0 0.0
  %1741 = vmatpush1.msra.mxu0 %v374
  %1742 = vmatprep.subr.mxu0 0.0
  %1743 = vmatpush1.msra.mxu0 %v377
  %1744 = vmatprep.subr.mxu0 0.0
  %1745 = vmatpush1.msra.mxu0 %v380
  %1746 = vmatprep.subr.mxu0 0.0
  %1747 = vmatpush1.msra.mxu0 %v383
  %1748 = vmatprep.subr.mxu0 0.0
  %1749 = vmatpush1.msra.mxu0 0.0
  %1750 = vmatprep.subr.mxu0 0.0
  %1751 = vmatpush1.msra.mxu0 0.0
  %1752 = vmatprep.subr.mxu0 0.0
  %1753 = vmatpush1.msra.mxu0 0.0
  %1754 = vmatprep.subr.mxu0 0.0
  %1755 = vmatpush1.msra.mxu0 0.0
  %1756 = vmatprep.subr.mxu0 0.0
  %1757 = vmatpush1.msra.mxu0 0.0
  %1758 = vmatprep.subr.mxu0 0.0
  %1759 = vmatpush1.msra.mxu0 0.0
  %1760 = vmatprep.subr.mxu0 0.0
  %1761 = vmatpush1.msra.mxu0 0.0
  %1762 = vmatprep.subr.mxu0 0.0
  %1763 = vmatpush1.msra.mxu0 0.0
  %1764 = vmatprep.subr.mxu0 0.0
  %1765 = vmatpush1.msra.mxu0 0.0
  %1766 = vmatprep.subr.mxu0 0.0
  %1767 = vmatpush1.msra.mxu0 0.0
  %1768 = vmatprep.subr.mxu0 0.0
  %1769 = vmatpush1.msra.mxu0 0.0
  %1770 = vmatprep.subr.mxu0 0.0
  %1771 = vmatpush1.msra.mxu0 0.0
  %1772 = vmatprep.subr.mxu0 0.0
  %1773 = vmatpush1.msra.mxu0 0.0
  %1774 = vmatprep.subr.mxu0 0.0
  %1775 = vmatpush1.msra.mxu0 0.0
  %1776 = vmatprep.subr.mxu0 0.0
  %1777 = vmatpush1.msra.mxu0 0.0
  %1778 = vmatprep.subr.mxu0 0.0
  %1779 = vmatpush1.msra.mxu0 0.0
  %1780 = vmatprep.mubr.f32.mxu0 0.0
  %1781 = vmatmul.mubr.f32.gmra.mrb[0].mxu0 %v1636
  %v1782 = vpop.f32.mrb[0].mxu0
  %v1783 = vadd.f32 %v403, %v1782
  %v1784 = vpop.f32.mrb[0].mxu0
  %1785 = vdwg.mxu0
  %v1786 = vadd.f32 %v1642, %v1712
  %v1787 = vxor.u32 %v1786, 2147483648
  %v1788 = vmul.f32 %v1787, 1.442695
  %v1789 = vpow.pop %v1788
  %v1790 = vadd.f32 %v1789, 1.0
  %v1791 = vrcp.pop %v1790
  %v1792 = vmul.f32 1.0, %v1791
  %v1793 = vadd.f32 %v1643, %v1714
  %v1794 = vxor.u32 %v1793, 2147483648
  %v1795 = vmul.f32 %v1794, 1.442695
  %v1796 = vpow.pop %v1795
  %v1797 = vadd.f32 %v1796, 1.0
  %v1798 = vrcp.pop %v1797
  %v1799 = vmul.f32 1.0, %v1798
  %v1800 = vmul.f32 %v1792, %v1783
  %v1801 = vadd.f32 %v1644, %v1800
  %v1802 = vtanh.pop %v1801
  %v1803 = vsub.f32 %v1636, %v1802
  %v1804 = vmul.f32 %v1799, %v1803
  %v1805 = vadd.f32 %v1802, %v1804
  %v1806 = vstv %s1640
  %vm1807 = vcmp.lt.s32.totalorder %v1806, %v385
  %v1808 = vsel %vm1807, 1, 0
  %1809 = vset.pattern.permute.xlu0 0
  %1810 = vperm.xlu0 %1809, %v1808
  %v1811 = vpop.permute.xlu0 %1810
  %vm1812 = vcmp.eq.s32.totalorder %v1811, 1
  %v1813 = vsel %vm1812, %v1805, %v1636
  %v1814 = vsel %vm1812, %v1805, 0.0
  %s1815 = scalar_lea.vmem %s7, 56
  %1816 = vst [vmem:[%s1815] sm:$0xff] %v1814
  %1817 = vst [vmem:[#allocation2] sm:$0xff] %v1813
  // Predicated region
  $region34: #{decoder_gru_forward.2} parent=0 // pred_check
    _
  $region35: #{decoder_gru_forward.2} parent=0 // pred_check_branch
    %1819 = sbr.rel (0) target = $region37
  $region36: #{decoder_gru_forward.2} parent=0 // pred_region
    _
  $region37: #{decoder_gru_forward.2} parent=0 // pred_fallthru
    _
  // Predicated region
  $region38: #{decoder_gru_forward.2} parent=0 // pred_check
    _
  $region39: #{decoder_gru_forward.2} parent=0 // pred_check_branch
    %1821 = sbr.rel (0) target = $region41
  $region40: #{decoder_gru_forward.2} parent=0 // pred_region
    _
  $region41: #{decoder_gru_forward.2} parent=0 // pred_fallthru
    _

</llo_original>
